<compile_context>
chip_gen: v6e
topology: v6e:2x2x1
jax: 0.10.0
libtpu: 0.0.40
codegen_flags: <defaults>
</compile_context>

<pallas_src>
import functools

import jax
import jax.numpy as jnp
import numpy as np
from jax.experimental import pallas as pl
from jax.experimental.pallas import tpu as pltpu


# ----------------------------- model config --------------------------------
LAYERS = 3
BLOCKS = 2
DILATION_CHANNELS = 8
RESIDUAL_CHANNELS = 8
SKIP_CHANNELS = 16
CLASSES = 16
OUTPUT_LENGTH = 4
KERNEL_SIZE = 2
BATCH = 2


def build_dilations(layers, blocks):
    dils = []
    for _ in range(blocks):
        d = 1
        for _ in range(layers):
            dils.append(d)
            d *= 2
    return tuple(dils)


DILATIONS = build_dilations(LAYERS, BLOCKS)
RECEPTIVE_FIELD = 1 + sum(d * (KERNEL_SIZE - 1) for d in DILATIONS)   # 15
INPUT_LENGTH = RECEPTIVE_FIELD + OUTPUT_LENGTH - 1                    # 18
TOTAL_CUT = sum(d * (KERNEL_SIZE - 1) for d in DILATIONS)             # 14
# Fixed internal per-sample length (multiple of 8), validity is right-aligned.
PAD_LENGTH = ((INPUT_LENGTH + 7) // 8) * 8                            # 24
FRONT_PAD = PAD_LENGTH - INPUT_LENGTH                                 # 6

# --- config-safety (see review): every read feeding a valid output position
# must stay inside the same sample's padded window and land on real input.
# Earliest read index (within a sample) for the first valid output:
_EARLIEST_READ = (PAD_LENGTH - OUTPUT_LENGTH) - TOTAL_CUT
assert _EARLIEST_READ >= 0, "dilated lookback crosses the sample boundary"
assert _EARLIEST_READ >= FRONT_PAD, "dilated lookback reads padding, not input"
assert max(DILATIONS) * (KERNEL_SIZE - 1) <= FRONT_PAD, \
    "per-layer shift could pull cross-sample data into positions that are read"


# ------------------------------ Pallas kernel -------------------------------
def wavenet_kernel(x_ref, sw_ref, fgw_ref, rsw_ref,
                   e1w_ref, e1b_ref, e2w_ref, e2b_ref, out_ref,
                   *, dilations, dil_ch, res_ch):
    # Layout: channels on sublanes, flattened+padded (sample, time) on lanes.
    # All activations stay f32; matmuls accumulate f32 on the MXU.
    def mm(w, a):
        return jnp.dot(w, a, preferred_element_type=jnp.float32)

    two_r = 2 * res_ch

    x = x_ref[...]                                   # (classes, M) f32
    h = mm(sw_ref[...], x)                           # start 1x1 conv -> (R, M)

    # Load the lane-dense weight stacks once; slice per layer at static offsets.
    fgw = fgw_ref[...]                               # (2D, nL*2R)
    rsw = rsw_ref[...]                               # (R+S, nL*D)

    skip = None
    for i, d in enumerate(dilations):
        # Dilated time shift: h_prev[:, t] == h[:, t-d] for all positions that
        # remain valid; the wrapped-around head lanes are don't-care.
        h_prev = pltpu.roll(h, shift=d, axis=1)                       # XLU vrot
        x2 = jnp.concatenate([h_prev, h], axis=0)                     # (2R, M)

        # Fused filter+gate, both taps in one matmul: (2D, 2R) @ (2R, M).
        fg = mm(fgw[:, i * two_r:(i + 1) * two_r], x2)                # (2D, M)
        # tanh-only gate: gate rows pre-scaled by 0.5, sigmoid(x)=0.5+0.5*tanh(x/2)
        t = jnp.tanh(fg)
        z = t[:dil_ch] * (0.5 + 0.5 * t[dil_ch:])                     # (D, M)

        # Fused residual+skip 1x1 convs: (R+S, D) @ (D, M).
        rs = mm(rsw[:, i * dil_ch:(i + 1) * dil_ch], z)               # (R+S, M)
        h = rs[:res_ch] + h                                           # residual
        s = rs[res_ch:]                                               # skip
        skip = s if skip is None else skip + s

    y = jnp.maximum(skip, 0.0)
    y = jnp.maximum(mm(e1w_ref[...], y) + e1b_ref[...], 0.0)
    out_ref[...] = mm(e2w_ref[...], y) + e2b_ref[...]                 # (classes, M)


# --------------------------------- wrapper ----------------------------------
def prep_input(x_ncl):
    """(N, classes, INPUT_LENGTH) -> (classes, M_pad), right-aligned per sample,
    lane axis zero-padded up to a multiple of 128."""
    n = x_ncl.shape[0]
    x_pad = jnp.pad(x_ncl, ((0, 0), (0, 0), (FRONT_PAD, 0)))
    x_cm = jnp.transpose(x_pad, (1, 0, 2)).reshape(CLASSES, n * PAD_LENGTH)
    m_valid = n * PAD_LENGTH
    m_pad = max(128, ((m_valid + 127) // 128) * 128)
    x_cm = jnp.pad(x_cm, ((0, 0), (0, m_pad - m_valid)))
    return x_cm, m_valid, m_pad


def wavenet_forward(x_ncl, kp):
    """x_ncl: (N, classes, INPUT_LENGTH) f32 -> (N, classes, OUTPUT_LENGTH) f32."""
    n = x_ncl.shape[0]
    x_cm, m_valid, m_pad = prep_input(x_ncl)

    kernel = functools.partial(wavenet_kernel, dilations=DILATIONS,
                               dil_ch=DILATION_CHANNELS, res_ch=RESIDUAL_CHANNELS)

    args = (x_cm, kp["start_w"], kp["fg_w"], kp["rs_w"],
            kp["end1_w"], kp["end1_b"], kp["end2_w"], kp["end2_b"])

    def full_spec(a):
        return pl.BlockSpec(a.shape, lambda g, nd=a.ndim: (0,) * nd)

    out_cm = pl.pallas_call(
        kernel,
        out_shape=jax.ShapeDtypeStruct((CLASSES, m_pad), jnp.float32),
        grid=(1,),                                 # whole batch in one step
        in_specs=[full_spec(a) for a in args],
        out_specs=pl.BlockSpec((CLASSES, m_pad), lambda g: (0, 0)),
        compiler_params=pltpu.CompilerParams(dimension_semantics=("arbitrary",)),
    )(*args)

    out = out_cm[:, :m_valid].reshape(CLASSES, n, PAD_LENGTH)
    out = out[:, :, PAD_LENGTH - OUTPUT_LENGTH:]
    return jnp.transpose(out, (1, 0, 2))           # (N, classes, OUTPUT_LENGTH)


# ------------------------- parameter construction ---------------------------
def init_params(key):
    """Deterministic weights in torch Conv1d layout (Cout, Cin, K), f32."""
    n_layers = len(DILATIONS)
    keys = jax.random.split(key, 8)
    sc = 0.2
    p = {
        "start_w": sc * jax.random.normal(keys[0], (RESIDUAL_CHANNELS, CLASSES, 1)),
        "filter_w": sc * jax.random.normal(
            keys[1], (n_layers, DILATION_CHANNELS, RESIDUAL_CHANNELS, KERNEL_SIZE)),
        "gate_w": sc * jax.random.normal(
            keys[2], (n_layers, DILATION_CHANNELS, RESIDUAL_CHANNELS, KERNEL_SIZE)),
        "res_w": sc * jax.random.normal(
            keys[3], (n_layers, RESIDUAL_CHANNELS, DILATION_CHANNELS, 1)),
        "skip_w": sc * jax.random.normal(
            keys[4], (n_layers, SKIP_CHANNELS, DILATION_CHANNELS, 1)),
        "end1_w": sc * jax.random.normal(keys[5], (SKIP_CHANNELS, SKIP_CHANNELS, 1)),
        "end1_b": sc * jax.random.normal(keys[6], (SKIP_CHANNELS,)),
        "end2_w": sc * jax.random.normal(keys[7], (CLASSES, SKIP_CHANNELS, 1)),
        "end2_b": jnp.zeros((CLASSES,), jnp.float32),
    }
    return jax.tree.map(lambda a: a.astype(jnp.float32), p)


def params_for_kernel(p):
    """Torch (Cout, Cin, K) weights -> fused, lane-dense f32 matmul weights."""
    d_ch, r_ch, s_ch = DILATION_CHANNELS, RESIDUAL_CHANNELS, SKIP_CHANNELS
    # gated conv weight: rows = [filter (D) | gate (D)], cols = [tap0 (R) | tap1 (R)]
    f_w = jnp.concatenate([p["filter_w"][..., 0], p["filter_w"][..., 1]], axis=-1)
    # gate rows pre-scaled by 0.5 for the tanh-only gate identity.
    g_w = 0.5 * jnp.concatenate([p["gate_w"][..., 0], p["gate_w"][..., 1]], axis=-1)
    fg_w = jnp.concatenate([f_w, g_w], axis=1)                        # (nL, 2D, 2R)
    # lane-dense layer stacking: (2D, nL*2R)
    fg_w = jnp.transpose(fg_w, (1, 0, 2)).reshape(2 * d_ch, -1)
    # residual+skip weight: rows = [res (R) | skip (S)], cols = Cin = D
    rs_w = jnp.concatenate([p["res_w"][..., 0], p["skip_w"][..., 0]], axis=1)  # (nL, R+S, D)
    rs_w = jnp.transpose(rs_w, (1, 0, 2)).reshape(r_ch + s_ch, -1)    # (R+S, nL*D)
    f32 = jnp.float32
    return {
        "start_w": p["start_w"][..., 0].astype(f32),                  # (R, classes)
        "fg_w": fg_w.astype(f32),                                     # (2D, nL*2R)
        "rs_w": rs_w.astype(f32),                                     # (R+S, nL*D)
        "end1_w": p["end1_w"][..., 0].astype(f32),                    # (S, S)
        "end1_b": p["end1_b"][:, None].astype(f32),                   # (S, 1)
        "end2_w": p["end2_w"][..., 0].astype(f32),                    # (classes, S)
        "end2_b": p["end2_b"][:, None].astype(f32),                   # (classes, 1)
    }


# ----------------------- references (pure JAX, no Pallas) --------------------
def reference_forward(x_ncl, p):
    """Torch-semantics f32 reference using dilated VALID convs (NCL layout)."""
    def conv(x, w, d=1, b=None):
        y = jax.lax.conv_general_dilated(
            x, w, window_strides=(1,), padding="VALID", rhs_dilation=(d,),
            dimension_numbers=("NCH", "OIH", "NCH"))
        if b is not None:
            y = y + b[None, :, None]
        return y

    h = conv(x_ncl, p["start_w"])
    skip = None
    for i, d in enumerate(DILATIONS):
        residual = h
        f = jnp.tanh(conv(h, p["filter_w"][i], d))
        g = jax.nn.sigmoid(conv(h, p["gate_w"][i], d))
        z = f * g
        s = conv(z, p["skip_w"][i])
        skip = s if skip is None else skip[:, :, -s.shape[2]:] + s
        h = conv(z, p["res_w"][i]) + residual[:, :, d * (KERNEL_SIZE - 1):]
    y = jax.nn.relu(skip)
    y = jax.nn.relu(conv(y, p["end1_w"], b=p["end1_b"]))
    return conv(y, p["end2_w"], b=p["end2_b"])


def emulated_forward(x_cm, kp):
    """Pure-JAX emulation of the exact kernel math (same layout & gate trick)."""
    def mm(w, a):
        return jnp.dot(w, a, preferred_element_type=jnp.float32)

    d_ch, r_ch = DILATION_CHANNELS, RESIDUAL_CHANNELS
    two_r = 2 * r_ch
    h = mm(kp["start_w"], x_cm)
    skip = None
    for i, d in enumerate(DILATIONS):
        x2 = jnp.concatenate([jnp.roll(h, d, axis=1), h], axis=0)
        t = jnp.tanh(mm(kp["fg_w"][:, i * two_r:(i + 1) * two_r], x2))
        z = t[:d_ch] * (0.5 + 0.5 * t[d_ch:])
        rs = mm(kp["rs_w"][:, i * d_ch:(i + 1) * d_ch], z)
        h = rs[:r_ch] + h
        s = rs[r_ch:]
        skip = s if skip is None else skip + s
    y = jax.nn.relu(skip)
    y = jax.nn.relu(mm(kp["end1_w"], y) + kp["end1_b"])
    return mm(kp["end2_w"], y) + kp["end2_b"]


# ---------------------------------- main -------------------------------------
if __name__ == "__main__":
    key = jax.random.PRNGKey(0)
    k_x, k_p = jax.random.split(key)

    # PyTorch input layout: (N, classes, L) with L = receptive_field + output - 1.
    x_ncl = jax.random.normal(k_x, (BATCH, CLASSES, INPUT_LENGTH), jnp.float32)

    torch_params = init_params(k_p)
    kp = params_for_kernel(torch_params)

    out = wavenet_forward(x_ncl, kp)
    out = jax.block_until_ready(out)
    assert out.shape == (BATCH, CLASSES, OUTPUT_LENGTH), out.shape

    # 1) tight check vs a pure-JAX emulation of the identical kernel math
    x_cm, m_valid, _ = prep_input(x_ncl)
    emu = emulated_forward(x_cm, kp)
    emu = emu[:, :m_valid].reshape(CLASSES, BATCH, PAD_LENGTH)
    emu = jnp.transpose(emu[:, :, PAD_LENGTH - OUTPUT_LENGTH:], (1, 0, 2))
    np.testing.assert_allclose(np.asarray(out), np.asarray(emu), rtol=2e-2, atol=2e-2)

    # 2) semantic check vs the f32 torch-style conv reference (sigmoid gate);
    #    tolerance covers default TPU matmul precision differences only.
    ref = reference_forward(x_ncl, torch_params)
    np.testing.assert_allclose(np.asarray(out), np.asarray(ref), rtol=5e-2, atol=5e-2)

    print("KERNEL_OK")
</pallas_src>

<mosaic_0001>
module attributes {stable_mosaic.version = 11 : i64} {
  func.func @wavenet_kernel(%arg0: i32, %arg1: memref<16x128xf32, #tpu.memory_space<vmem>>, %arg2: memref<8x16xf32, #tpu.memory_space<vmem>>, %arg3: memref<16x96xf32, #tpu.memory_space<vmem>>, %arg4: memref<24x48xf32, #tpu.memory_space<vmem>>, %arg5: memref<16x16xf32, #tpu.memory_space<vmem>>, %arg6: memref<16x1xf32, #tpu.memory_space<vmem>>, %arg7: memref<16x16xf32, #tpu.memory_space<vmem>>, %arg8: memref<16x1xf32, #tpu.memory_space<vmem>>, %arg9: memref<16x128xf32, #tpu.memory_space<vmem>>) attributes {dimension_semantics = [#tpu.dimension_semantics<arbitrary>], iteration_bounds = array<i64: 1>, scalar_prefetch = 0 : i64, scratch_operands = 0 : i64, tpu.core_type = #tpu.core_type<tc>, window_params = [{pipeline_mode = #tpu.pipeline_mode<synchronous>, transform_indices = @transform_0, window_bounds = array<i64: 16, 128>}, {pipeline_mode = #tpu.pipeline_mode<synchronous>, transform_indices = @transform_1, window_bounds = array<i64: 8, 16>}, {pipeline_mode = #tpu.pipeline_mode<synchronous>, transform_indices = @transform_2, window_bounds = array<i64: 16, 96>}, {pipeline_mode = #tpu.pipeline_mode<synchronous>, transform_indices = @transform_3, window_bounds = array<i64: 24, 48>}, {pipeline_mode = #tpu.pipeline_mode<synchronous>, transform_indices = @transform_4, window_bounds = array<i64: 16, 16>}, {pipeline_mode = #tpu.pipeline_mode<synchronous>, transform_indices = @transform_5, window_bounds = array<i64: 16, 1>}, {pipeline_mode = #tpu.pipeline_mode<synchronous>, transform_indices = @transform_6, window_bounds = array<i64: 16, 16>}, {pipeline_mode = #tpu.pipeline_mode<synchronous>, transform_indices = @transform_7, window_bounds = array<i64: 16, 1>}, {pipeline_mode = #tpu.pipeline_mode<synchronous>, transform_indices = @transform_8, window_bounds = array<i64: 16, 128>}]} {
    %c0 = arith.constant 0 : index
    %c0_0 = arith.constant 0 : index
    %0 = vector.load %arg1[%c0, %c0_0] : memref<16x128xf32, #tpu.memory_space<vmem>>, vector<16x128xf32>
    %c0_1 = arith.constant 0 : index
    %c0_2 = arith.constant 0 : index
    %1 = vector.load %arg2[%c0_1, %c0_2] : memref<8x16xf32, #tpu.memory_space<vmem>>, vector<8x16xf32>
    %cst = arith.constant dense<0.000000e+00> : vector<8x128xf32>
    %2 = tpu.matmul %1, %0, %cst {dimension_numbers = #tpu.dot_dimension_numbers<[1], [0], [0], [1], [0, 0, 1, 1], [], []>} : vector<8x16xf32>, vector<16x128xf32>, vector<8x128xf32> -> vector<8x128xf32>
    %c0_3 = arith.constant 0 : index
    %c0_4 = arith.constant 0 : index
    %3 = vector.load %arg3[%c0_3, %c0_4] : memref<16x96xf32, #tpu.memory_space<vmem>>, vector<16x96xf32>
    %c0_5 = arith.constant 0 : index
    %c0_6 = arith.constant 0 : index
    %4 = vector.load %arg4[%c0_5, %c0_6] : memref<24x48xf32, #tpu.memory_space<vmem>>, vector<24x48xf32>
    %c1_i32 = arith.constant 1 : i32
    %5 = tpu.dynamic_rotate %2 by %c1_i32 dim 1 : vector<8x128xf32>, i32 -> vector<8x128xf32>
    %6 = tpu.concatenate %5, %2 in 0 : vector<8x128xf32>, vector<8x128xf32> -> vector<16x128xf32>
    %7 = vector.extract_strided_slice %3 {offsets = [0, 0], sizes = [16, 16], strides = [1, 1]} : vector<16x96xf32> to vector<16x16xf32>
    %cst_7 = arith.constant dense<0.000000e+00> : vector<16x128xf32>
    %8 = tpu.matmul %7, %6, %cst_7 {dimension_numbers = #tpu.dot_dimension_numbers<[1], [0], [0], [1], [0, 0, 1, 1], [], []>} : vector<16x16xf32>, vector<16x128xf32>, vector<16x128xf32> -> vector<16x128xf32>
    %9 = math.tanh %8 : vector<16x128xf32>
    %10 = vector.extract_strided_slice %9 {offsets = [0, 0], sizes = [8, 128], strides = [1, 1]} : vector<16x128xf32> to vector<8x128xf32>
    %11 = vector.extract_strided_slice %9 {offsets = [8, 0], sizes = [8, 128], strides = [1, 1]} : vector<16x128xf32> to vector<8x128xf32>
    %cst_8 = arith.constant 5.000000e-01 : f32
    %12 = vector.broadcast %cst_8 : f32 to vector<8x128xf32>
    %13 = arith.mulf %12, %11 : vector<8x128xf32>
    %cst_9 = arith.constant 5.000000e-01 : f32
    %14 = vector.broadcast %cst_9 : f32 to vector<8x128xf32>
    %15 = arith.addf %14, %13 : vector<8x128xf32>
    %16 = arith.mulf %10, %15 : vector<8x128xf32>
    %17 = vector.extract_strided_slice %4 {offsets = [0, 0], sizes = [24, 8], strides = [1, 1]} : vector<24x48xf32> to vector<24x8xf32>
    %cst_10 = arith.constant dense<0.000000e+00> : vector<24x128xf32>
    %18 = tpu.matmul %17, %16, %cst_10 {dimension_numbers = #tpu.dot_dimension_numbers<[1], [0], [0], [1], [0, 0, 1, 1], [], []>} : vector<24x8xf32>, vector<8x128xf32>, vector<24x128xf32> -> vector<24x128xf32>
    %19 = vector.extract_strided_slice %18 {offsets = [0, 0], sizes = [8, 128], strides = [1, 1]} : vector<24x128xf32> to vector<8x128xf32>
    %20 = arith.addf %19, %2 : vector<8x128xf32>
    %21 = vector.extract_strided_slice %18 {offsets = [8, 0], sizes = [16, 128], strides = [1, 1]} : vector<24x128xf32> to vector<16x128xf32>
    %c2_i32 = arith.constant 2 : i32
    %22 = tpu.dynamic_rotate %20 by %c2_i32 dim 1 : vector<8x128xf32>, i32 -> vector<8x128xf32>
    %23 = tpu.concatenate %22, %20 in 0 : vector<8x128xf32>, vector<8x128xf32> -> vector<16x128xf32>
    %24 = vector.extract_strided_slice %3 {offsets = [0, 16], sizes = [16, 16], strides = [1, 1]} : vector<16x96xf32> to vector<16x16xf32>
    %cst_11 = arith.constant dense<0.000000e+00> : vector<16x128xf32>
    %25 = tpu.matmul %24, %23, %cst_11 {dimension_numbers = #tpu.dot_dimension_numbers<[1], [0], [0], [1], [0, 0, 1, 1], [], []>} : vector<16x16xf32>, vector<16x128xf32>, vector<16x128xf32> -> vector<16x128xf32>
    %26 = math.tanh %25 : vector<16x128xf32>
    %27 = vector.extract_strided_slice %26 {offsets = [0, 0], sizes = [8, 128], strides = [1, 1]} : vector<16x128xf32> to vector<8x128xf32>
    %28 = vector.extract_strided_slice %26 {offsets = [8, 0], sizes = [8, 128], strides = [1, 1]} : vector<16x128xf32> to vector<8x128xf32>
    %cst_12 = arith.constant 5.000000e-01 : f32
    %29 = vector.broadcast %cst_12 : f32 to vector<8x128xf32>
    %30 = arith.mulf %29, %28 : vector<8x128xf32>
    %cst_13 = arith.constant 5.000000e-01 : f32
    %31 = vector.broadcast %cst_13 : f32 to vector<8x128xf32>
    %32 = arith.addf %31, %30 : vector<8x128xf32>
    %33 = arith.mulf %27, %32 : vector<8x128xf32>
    %34 = vector.extract_strided_slice %4 {offsets = [0, 8], sizes = [24, 8], strides = [1, 1]} : vector<24x48xf32> to vector<24x8xf32>
    %cst_14 = arith.constant dense<0.000000e+00> : vector<24x128xf32>
    %35 = tpu.matmul %34, %33, %cst_14 {dimension_numbers = #tpu.dot_dimension_numbers<[1], [0], [0], [1], [0, 0, 1, 1], [], []>} : vector<24x8xf32>, vector<8x128xf32>, vector<24x128xf32> -> vector<24x128xf32>
    %36 = vector.extract_strided_slice %35 {offsets = [0, 0], sizes = [8, 128], strides = [1, 1]} : vector<24x128xf32> to vector<8x128xf32>
    %37 = arith.addf %36, %20 : vector<8x128xf32>
    %38 = vector.extract_strided_slice %35 {offsets = [8, 0], sizes = [16, 128], strides = [1, 1]} : vector<24x128xf32> to vector<16x128xf32>
    %39 = arith.addf %21, %38 : vector<16x128xf32>
    %c4_i32 = arith.constant 4 : i32
    %40 = tpu.dynamic_rotate %37 by %c4_i32 dim 1 : vector<8x128xf32>, i32 -> vector<8x128xf32>
    %41 = tpu.concatenate %40, %37 in 0 : vector<8x128xf32>, vector<8x128xf32> -> vector<16x128xf32>
    %42 = vector.extract_strided_slice %3 {offsets = [0, 32], sizes = [16, 16], strides = [1, 1]} : vector<16x96xf32> to vector<16x16xf32>
    %cst_15 = arith.constant dense<0.000000e+00> : vector<16x128xf32>
    %43 = tpu.matmul %42, %41, %cst_15 {dimension_numbers = #tpu.dot_dimension_numbers<[1], [0], [0], [1], [0, 0, 1, 1], [], []>} : vector<16x16xf32>, vector<16x128xf32>, vector<16x128xf32> -> vector<16x128xf32>
    %44 = math.tanh %43 : vector<16x128xf32>
    %45 = vector.extract_strided_slice %44 {offsets = [0, 0], sizes = [8, 128], strides = [1, 1]} : vector<16x128xf32> to vector<8x128xf32>
    %46 = vector.extract_strided_slice %44 {offsets = [8, 0], sizes = [8, 128], strides = [1, 1]} : vector<16x128xf32> to vector<8x128xf32>
    %cst_16 = arith.constant 5.000000e-01 : f32
    %47 = vector.broadcast %cst_16 : f32 to vector<8x128xf32>
    %48 = arith.mulf %47, %46 : vector<8x128xf32>
    %cst_17 = arith.constant 5.000000e-01 : f32
    %49 = vector.broadcast %cst_17 : f32 to vector<8x128xf32>
    %50 = arith.addf %49, %48 : vector<8x128xf32>
    %51 = arith.mulf %45, %50 : vector<8x128xf32>
    %52 = vector.extract_strided_slice %4 {offsets = [0, 16], sizes = [24, 8], strides = [1, 1]} : vector<24x48xf32> to vector<24x8xf32>
    %cst_18 = arith.constant dense<0.000000e+00> : vector<24x128xf32>
    %53 = tpu.matmul %52, %51, %cst_18 {dimension_numbers = #tpu.dot_dimension_numbers<[1], [0], [0], [1], [0, 0, 1, 1], [], []>} : vector<24x8xf32>, vector<8x128xf32>, vector<24x128xf32> -> vector<24x128xf32>
    %54 = vector.extract_strided_slice %53 {offsets = [0, 0], sizes = [8, 128], strides = [1, 1]} : vector<24x128xf32> to vector<8x128xf32>
    %55 = arith.addf %54, %37 : vector<8x128xf32>
    %56 = vector.extract_strided_slice %53 {offsets = [8, 0], sizes = [16, 128], strides = [1, 1]} : vector<24x128xf32> to vector<16x128xf32>
    %57 = arith.addf %39, %56 : vector<16x128xf32>
    %c1_i32_19 = arith.constant 1 : i32
    %58 = tpu.dynamic_rotate %55 by %c1_i32_19 dim 1 : vector<8x128xf32>, i32 -> vector<8x128xf32>
    %59 = tpu.concatenate %58, %55 in 0 : vector<8x128xf32>, vector<8x128xf32> -> vector<16x128xf32>
    %60 = vector.extract_strided_slice %3 {offsets = [0, 48], sizes = [16, 16], strides = [1, 1]} : vector<16x96xf32> to vector<16x16xf32>
    %cst_20 = arith.constant dense<0.000000e+00> : vector<16x128xf32>
    %61 = tpu.matmul %60, %59, %cst_20 {dimension_numbers = #tpu.dot_dimension_numbers<[1], [0], [0], [1], [0, 0, 1, 1], [], []>} : vector<16x16xf32>, vector<16x128xf32>, vector<16x128xf32> -> vector<16x128xf32>
    %62 = math.tanh %61 : vector<16x128xf32>
    %63 = vector.extract_strided_slice %62 {offsets = [0, 0], sizes = [8, 128], strides = [1, 1]} : vector<16x128xf32> to vector<8x128xf32>
    %64 = vector.extract_strided_slice %62 {offsets = [8, 0], sizes = [8, 128], strides = [1, 1]} : vector<16x128xf32> to vector<8x128xf32>
    %cst_21 = arith.constant 5.000000e-01 : f32
    %65 = vector.broadcast %cst_21 : f32 to vector<8x128xf32>
    %66 = arith.mulf %65, %64 : vector<8x128xf32>
    %cst_22 = arith.constant 5.000000e-01 : f32
    %67 = vector.broadcast %cst_22 : f32 to vector<8x128xf32>
    %68 = arith.addf %67, %66 : vector<8x128xf32>
    %69 = arith.mulf %63, %68 : vector<8x128xf32>
    %70 = vector.extract_strided_slice %4 {offsets = [0, 24], sizes = [24, 8], strides = [1, 1]} : vector<24x48xf32> to vector<24x8xf32>
    %cst_23 = arith.constant dense<0.000000e+00> : vector<24x128xf32>
    %71 = tpu.matmul %70, %69, %cst_23 {dimension_numbers = #tpu.dot_dimension_numbers<[1], [0], [0], [1], [0, 0, 1, 1], [], []>} : vector<24x8xf32>, vector<8x128xf32>, vector<24x128xf32> -> vector<24x128xf32>
    %72 = vector.extract_strided_slice %71 {offsets = [0, 0], sizes = [8, 128], strides = [1, 1]} : vector<24x128xf32> to vector<8x128xf32>
    %73 = arith.addf %72, %55 : vector<8x128xf32>
    %74 = vector.extract_strided_slice %71 {offsets = [8, 0], sizes = [16, 128], strides = [1, 1]} : vector<24x128xf32> to vector<16x128xf32>
    %75 = arith.addf %57, %74 : vector<16x128xf32>
    %c2_i32_24 = arith.constant 2 : i32
    %76 = tpu.dynamic_rotate %73 by %c2_i32_24 dim 1 : vector<8x128xf32>, i32 -> vector<8x128xf32>
    %77 = tpu.concatenate %76, %73 in 0 : vector<8x128xf32>, vector<8x128xf32> -> vector<16x128xf32>
    %78 = vector.extract_strided_slice %3 {offsets = [0, 64], sizes = [16, 16], strides = [1, 1]} : vector<16x96xf32> to vector<16x16xf32>
    %cst_25 = arith.constant dense<0.000000e+00> : vector<16x128xf32>
    %79 = tpu.matmul %78, %77, %cst_25 {dimension_numbers = #tpu.dot_dimension_numbers<[1], [0], [0], [1], [0, 0, 1, 1], [], []>} : vector<16x16xf32>, vector<16x128xf32>, vector<16x128xf32> -> vector<16x128xf32>
    %80 = math.tanh %79 : vector<16x128xf32>
    %81 = vector.extract_strided_slice %80 {offsets = [0, 0], sizes = [8, 128], strides = [1, 1]} : vector<16x128xf32> to vector<8x128xf32>
    %82 = vector.extract_strided_slice %80 {offsets = [8, 0], sizes = [8, 128], strides = [1, 1]} : vector<16x128xf32> to vector<8x128xf32>
    %cst_26 = arith.constant 5.000000e-01 : f32
    %83 = vector.broadcast %cst_26 : f32 to vector<8x128xf32>
    %84 = arith.mulf %83, %82 : vector<8x128xf32>
    %cst_27 = arith.constant 5.000000e-01 : f32
    %85 = vector.broadcast %cst_27 : f32 to vector<8x128xf32>
    %86 = arith.addf %85, %84 : vector<8x128xf32>
    %87 = arith.mulf %81, %86 : vector<8x128xf32>
    %88 = vector.extract_strided_slice %4 {offsets = [0, 32], sizes = [24, 8], strides = [1, 1]} : vector<24x48xf32> to vector<24x8xf32>
    %cst_28 = arith.constant dense<0.000000e+00> : vector<24x128xf32>
    %89 = tpu.matmul %88, %87, %cst_28 {dimension_numbers = #tpu.dot_dimension_numbers<[1], [0], [0], [1], [0, 0, 1, 1], [], []>} : vector<24x8xf32>, vector<8x128xf32>, vector<24x128xf32> -> vector<24x128xf32>
    %90 = vector.extract_strided_slice %89 {offsets = [0, 0], sizes = [8, 128], strides = [1, 1]} : vector<24x128xf32> to vector<8x128xf32>
    %91 = arith.addf %90, %73 : vector<8x128xf32>
    %92 = vector.extract_strided_slice %89 {offsets = [8, 0], sizes = [16, 128], strides = [1, 1]} : vector<24x128xf32> to vector<16x128xf32>
    %93 = arith.addf %75, %92 : vector<16x128xf32>
    %c4_i32_29 = arith.constant 4 : i32
    %94 = tpu.dynamic_rotate %91 by %c4_i32_29 dim 1 : vector<8x128xf32>, i32 -> vector<8x128xf32>
    %95 = tpu.concatenate %94, %91 in 0 : vector<8x128xf32>, vector<8x128xf32> -> vector<16x128xf32>
    %96 = vector.extract_strided_slice %3 {offsets = [0, 80], sizes = [16, 16], strides = [1, 1]} : vector<16x96xf32> to vector<16x16xf32>
    %cst_30 = arith.constant dense<0.000000e+00> : vector<16x128xf32>
    %97 = tpu.matmul %96, %95, %cst_30 {dimension_numbers = #tpu.dot_dimension_numbers<[1], [0], [0], [1], [0, 0, 1, 1], [], []>} : vector<16x16xf32>, vector<16x128xf32>, vector<16x128xf32> -> vector<16x128xf32>
    %98 = math.tanh %97 : vector<16x128xf32>
    %99 = vector.extract_strided_slice %98 {offsets = [0, 0], sizes = [8, 128], strides = [1, 1]} : vector<16x128xf32> to vector<8x128xf32>
    %100 = vector.extract_strided_slice %98 {offsets = [8, 0], sizes = [8, 128], strides = [1, 1]} : vector<16x128xf32> to vector<8x128xf32>
    %cst_31 = arith.constant 5.000000e-01 : f32
    %101 = vector.broadcast %cst_31 : f32 to vector<8x128xf32>
    %102 = arith.mulf %101, %100 : vector<8x128xf32>
    %cst_32 = arith.constant 5.000000e-01 : f32
    %103 = vector.broadcast %cst_32 : f32 to vector<8x128xf32>
    %104 = arith.addf %103, %102 : vector<8x128xf32>
    %105 = arith.mulf %99, %104 : vector<8x128xf32>
    %106 = vector.extract_strided_slice %4 {offsets = [0, 40], sizes = [24, 8], strides = [1, 1]} : vector<24x48xf32> to vector<24x8xf32>
    %cst_33 = arith.constant dense<0.000000e+00> : vector<24x128xf32>
    %107 = tpu.matmul %106, %105, %cst_33 {dimension_numbers = #tpu.dot_dimension_numbers<[1], [0], [0], [1], [0, 0, 1, 1], [], []>} : vector<24x8xf32>, vector<8x128xf32>, vector<24x128xf32> -> vector<24x128xf32>
    %108 = vector.extract_strided_slice %107 {offsets = [8, 0], sizes = [16, 128], strides = [1, 1]} : vector<24x128xf32> to vector<16x128xf32>
    %109 = arith.addf %93, %108 : vector<16x128xf32>
    %cst_34 = arith.constant 0.000000e+00 : f32
    %110 = vector.broadcast %cst_34 : f32 to vector<16x128xf32>
    %111 = arith.maximumf %109, %110 : vector<16x128xf32>
    %c0_35 = arith.constant 0 : index
    %c0_36 = arith.constant 0 : index
    %112 = vector.load %arg5[%c0_35, %c0_36] : memref<16x16xf32, #tpu.memory_space<vmem>>, vector<16x16xf32>
    %cst_37 = arith.constant dense<0.000000e+00> : vector<16x128xf32>
    %113 = tpu.matmul %112, %111, %cst_37 {dimension_numbers = #tpu.dot_dimension_numbers<[1], [0], [0], [1], [0, 0, 1, 1], [], []>} : vector<16x16xf32>, vector<16x128xf32>, vector<16x128xf32> -> vector<16x128xf32>
    %c0_38 = arith.constant 0 : index
    %c0_39 = arith.constant 0 : index
    %114 = vector.load %arg6[%c0_38, %c0_39] : memref<16x1xf32, #tpu.memory_space<vmem>>, vector<16x1xf32>
    %115 = vector.broadcast %114 : vector<16x1xf32> to vector<16x128xf32>
    %116 = arith.addf %113, %115 : vector<16x128xf32>
    %cst_40 = arith.constant 0.000000e+00 : f32
    %117 = vector.broadcast %cst_40 : f32 to vector<16x128xf32>
    %118 = arith.maximumf %116, %117 : vector<16x128xf32>
    %c0_41 = arith.constant 0 : index
    %c0_42 = arith.constant 0 : index
    %119 = vector.load %arg7[%c0_41, %c0_42] : memref<16x16xf32, #tpu.memory_space<vmem>>, vector<16x16xf32>
    %cst_43 = arith.constant dense<0.000000e+00> : vector<16x128xf32>
    %120 = tpu.matmul %119, %118, %cst_43 {dimension_numbers = #tpu.dot_dimension_numbers<[1], [0], [0], [1], [0, 0, 1, 1], [], []>} : vector<16x16xf32>, vector<16x128xf32>, vector<16x128xf32> -> vector<16x128xf32>
    %c0_44 = arith.constant 0 : index
    %c0_45 = arith.constant 0 : index
    %121 = vector.load %arg8[%c0_44, %c0_45] : memref<16x1xf32, #tpu.memory_space<vmem>>, vector<16x1xf32>
    %122 = vector.broadcast %121 : vector<16x1xf32> to vector<16x128xf32>
    %123 = arith.addf %120, %122 : vector<16x128xf32>
    %c0_46 = arith.constant 0 : index
    %c0_47 = arith.constant 0 : index
    %124 = vector.load %arg9[%c0_46, %c0_47] : memref<16x128xf32, #tpu.memory_space<vmem>>, vector<16x128xf32>
    tpu.vector_store %arg9[%c0_46, %c0_47], %123 {strides = array<i32>} : memref<16x128xf32, #tpu.memory_space<vmem>>, vector<16x128xf32>,
    return
  }
  func.func @transform_0(%arg0: i32) -> (i32, i32) {
    %c0_i32 = arith.constant 0 : i32
    %c0_i32_0 = arith.constant 0 : i32
    %c0_i32_1 = arith.constant 0 : i32
    return %c0_i32, %c0_i32_0 : i32, i32
  }
  func.func @transform_1(%arg0: i32) -> (i32, i32) {
    %c0_i32 = arith.constant 0 : i32
    %c0_i32_0 = arith.constant 0 : i32
    %c0_i32_1 = arith.constant 0 : i32
    return %c0_i32, %c0_i32_0 : i32, i32
  }
  func.func @transform_2(%arg0: i32) -> (i32, i32) {
    %c0_i32 = arith.constant 0 : i32
    %c0_i32_0 = arith.constant 0 : i32
    %c0_i32_1 = arith.constant 0 : i32
    return %c0_i32, %c0_i32_0 : i32, i32
  }
  func.func @transform_3(%arg0: i32) -> (i32, i32) {
    %c0_i32 = arith.constant 0 : i32
    %c0_i32_0 = arith.constant 0 : i32
    %c0_i32_1 = arith.constant 0 : i32
    return %c0_i32, %c0_i32_0 : i32, i32
  }
  func.func @transform_4(%arg0: i32) -> (i32, i32) {
    %c0_i32 = arith.constant 0 : i32
    %c0_i32_0 = arith.constant 0 : i32
    %c0_i32_1 = arith.constant 0 : i32
    return %c0_i32, %c0_i32_0 : i32, i32
  }
  func.func @transform_5(%arg0: i32) -> (i32, i32) {
    %c0_i32 = arith.constant 0 : i32
    %c0_i32_0 = arith.constant 0 : i32
    %c0_i32_1 = arith.constant 0 : i32
    return %c0_i32, %c0_i32_0 : i32, i32
  }
  func.func @transform_6(%arg0: i32) -> (i32, i32) {
    %c0_i32 = arith.constant 0 : i32
    %c0_i32_0 = arith.constant 0 : i32
    %c0_i32_1 = arith.constant 0 : i32
    return %c0_i32, %c0_i32_0 : i32, i32
  }
  func.func @transform_7(%arg0: i32) -> (i32, i32) {
    %c0_i32 = arith.constant 0 : i32
    %c0_i32_0 = arith.constant 0 : i32
    %c0_i32_1 = arith.constant 0 : i32
    return %c0_i32, %c0_i32_0 : i32, i32
  }
  func.func @transform_8(%arg0: i32) -> (i32, i32) {
    %c0_i32 = arith.constant 0 : i32
    %c0_i32_0 = arith.constant 0 : i32
    %c0_i32_1 = arith.constant 0 : i32
    return %c0_i32, %c0_i32_0 : i32, i32
  }
}

</mosaic_0001>

<llo_original>
// kernel: tpu_custom_call.1
$region0: #{tpu_custom_call.1}
  #allocation0 [shape = 'u32[]', space=smem, size = 0x4, offset = 0x4, fixed_abs, tag = 'smem constant byte address 0x4 - core index']
  #allocation1 [shape = 'u32[144,128]{1,0:T(1,128)}', space=vmem, size = 0x12000, scoped, tag = 'internal scratch']
  %s0 = inlined_call_operand.hbm [shape: f32[16,128], index: 0, kind: input, shape index: {}]
  %s1 = inlined_call_operand.hbm [shape: f32[8,16], index: 1, kind: input, shape index: {}]
  %s2 = inlined_call_operand.hbm [shape: f32[16,96], index: 2, kind: input, shape index: {}]
  %s3 = inlined_call_operand.vmem [shape: f32[24,48], index: 3, kind: input, shape index: {}]
  %s4 = inlined_call_operand.vmem [shape: f32[16,16], index: 4, kind: input, shape index: {}]
  %s5 = inlined_call_operand.vmem [shape: f32[16,1], index: 5, kind: input, shape index: {}]
  %s6 = inlined_call_operand.hbm [shape: f32[16,16], index: 6, kind: input, shape index: {}]
  %s7 = inlined_call_operand.vmem [shape: f32[16,1], index: 7, kind: input, shape index: {}]
  %s8 = inlined_call_operand.hbm [shape: f32[16,128], index: 8, kind: output, shape index: {}]
  %s9 = sld [smem:[#allocation0]]
  $region58: #{tpu_custom_call.1} parent=0
    _
  %s11 = ssub.s32 1, %s9
  %s12 = scalar_select 0, %s11, %s9
  $region1: #{tpu_custom_call.1} parent=0
    #allocation2 [shape = 'u8[8192]{0}', space=vmem, size = 0x2000, scoped, tag = 'input window, operand 0, single buffered']
    #allocation3 [shape = 's32[1]{0}', space=sflag, size = 0x4, scoped, tag = 'scoped memory for tpu_custom_call.1']
    #allocation4 [shape = 's32[1]{0}', space=sflag, size = 0x4, scoped, tag = 'scoped memory for tpu_custom_call.1']
    #allocation5 [shape = 'u8[4096]{0}', space=vmem, size = 0x1000, scoped, tag = 'input window, operand 1, single buffered']
    #allocation6 [shape = 's32[1]{0}', space=sflag, size = 0x4, scoped, tag = 'scoped memory for tpu_custom_call.1']
    #allocation7 [shape = 'u8[8192]{0}', space=vmem, size = 0x2000, scoped, tag = 'input window, operand 2, single buffered']
    #allocation8 [shape = 'u8[8192]{0}', space=vmem, size = 0x2000, scoped, tag = 'input window, operand 6, single buffered']
    #allocation9 [shape = 's32[1]{0}', space=sflag, size = 0x4, scoped, tag = 'scoped memory for tpu_custom_call.1']
    #allocation10 [shape = 'u8[8192]{0}', space=vmem, size = 0x2000, scoped, tag = 'output window, operand 0, single buffered']
    %13 = vsyncpa [#allocation3], 0
    %14 = vsyncpa [#allocation6], 0
    %15 = vsyncpa [#allocation9], 0
    %16 = vsyncpa [#allocation4], 0
    // Predicated region
    $region2: #{tpu_custom_call.1} parent=1 // pred_check
      _
    $region3: #{tpu_custom_call.1} parent=1 // pred_check_branch
      %18 = sbr.rel (0) target = $region5
    $region4: #{tpu_custom_call.1} parent=1 // pred_region
      %s20 = ssub.s32 256, 256
      %21 = vsyncadd [#allocation3], %s20
      %s22 = sshll.u32 [#allocation2], 4
      %s23 = int_to_ptr.vmem [resolvable:$true] %s22
      %28 = dma.hbm_to_vmem [thread:$0]  %s0, 256, %s23, [#allocation3], 128, 128, 8
    $region5: #{tpu_custom_call.1} parent=1 // pred_fallthru
      _
    // Predicated region
    $region6: #{tpu_custom_call.1} parent=1 // pred_check
      _
    $region7: #{tpu_custom_call.1} parent=1 // pred_check_branch
      %30 = sbr.rel (0) target = $region9
    $region8: #{tpu_custom_call.1} parent=1 // pred_region
      %s32 = ssub.s32 128, 128
      %33 = vsyncadd [#allocation6], %s32
      %s35 = sshll.u32 [#allocation5], 4
      %s36 = int_to_ptr.vmem [resolvable:$true] %s35
      %38 = dma.hbm_to_vmem [thread:$0]  %s1, 128, %s36, [#allocation6]
    $region9: #{tpu_custom_call.1} parent=1 // pred_fallthru
      _
    // Predicated region
    $region10: #{tpu_custom_call.1} parent=1 // pred_check
      _
    $region11: #{tpu_custom_call.1} parent=1 // pred_check_branch
      %40 = sbr.rel (0) target = $region13
    $region12: #{tpu_custom_call.1} parent=1 // pred_region
      %s42 = ssub.s32 256, 256
      %43 = vsyncadd [#allocation6], %s42
      %s44 = sshll.u32 [#allocation7], 4
      %s45 = int_to_ptr.vmem [resolvable:$true] %s44
      %50 = dma.hbm_to_vmem [thread:$0]  %s2, 256, %s45, [#allocation6], 128, 128, 8
    $region13: #{tpu_custom_call.1} parent=1 // pred_fallthru
      _
    // Predicated region
    $region14: #{tpu_custom_call.1} parent=1 // pred_check
      _
    $region15: #{tpu_custom_call.1} parent=1 // pred_check_branch
      %52 = sbr.rel (0) target = $region17
    $region16: #{tpu_custom_call.1} parent=1 // pred_region
      _
    $region17: #{tpu_custom_call.1} parent=1 // pred_fallthru
      _
    // Predicated region
    $region18: #{tpu_custom_call.1} parent=1 // pred_check
      _
    $region19: #{tpu_custom_call.1} parent=1 // pred_check_branch
      %54 = sbr.rel (0) target = $region21
    $region20: #{tpu_custom_call.1} parent=1 // pred_region
      _
    $region21: #{tpu_custom_call.1} parent=1 // pred_fallthru
      _
    // Predicated region
    $region22: #{tpu_custom_call.1} parent=1 // pred_check
      _
    $region23: #{tpu_custom_call.1} parent=1 // pred_check_branch
      %56 = sbr.rel (0) target = $region25
    $region24: #{tpu_custom_call.1} parent=1 // pred_region
      _
    $region25: #{tpu_custom_call.1} parent=1 // pred_fallthru
      _
    // Predicated region
    $region26: #{tpu_custom_call.1} parent=1 // pred_check
      _
    $region27: #{tpu_custom_call.1} parent=1 // pred_check_branch
      %58 = sbr.rel (0) target = $region29
    $region28: #{tpu_custom_call.1} parent=1 // pred_region
      %s60 = ssub.s32 256, 256
      %61 = vsyncadd [#allocation9], %s60
      %s62 = sshll.u32 [#allocation8], 4
      %s63 = int_to_ptr.vmem [resolvable:$true] %s62
      %68 = dma.hbm_to_vmem [thread:$0]  %s6, 256, %s63, [#allocation9], 128, 128, 8
    $region29: #{tpu_custom_call.1} parent=1 // pred_fallthru
      _
    // Predicated region
    $region30: #{tpu_custom_call.1} parent=1 // pred_check
      _
    $region31: #{tpu_custom_call.1} parent=1 // pred_check_branch
      %70 = sbr.rel (0) target = $region33
    $region32: #{tpu_custom_call.1} parent=1 // pred_region
      _
    $region33: #{tpu_custom_call.1} parent=1 // pred_fallthru
      _
    // Predicated region
    $region34: #{tpu_custom_call.1} parent=1 // pred_check
      _
    $region35: #{tpu_custom_call.1} parent=1 // pred_check_branch
      %72 = sbr.rel (0) target = $region37
    $region36: #{tpu_custom_call.1} parent=1 // pred_region
      %73 = dma.done [#allocation3], 256
    $region37: #{tpu_custom_call.1} parent=1 // pred_fallthru
      _
    // Predicated region
    $region38: #{tpu_custom_call.1} parent=1 // pred_check
      _
    $region39: #{tpu_custom_call.1} parent=1 // pred_check_branch
      %75 = sbr.rel (0) target = $region41
    $region40: #{tpu_custom_call.1} parent=1 // pred_region
      %76 = dma.done [#allocation6], 128
    $region41: #{tpu_custom_call.1} parent=1 // pred_fallthru
      _
    // Predicated region
    $region42: #{tpu_custom_call.1} parent=1 // pred_check
      _
    $region43: #{tpu_custom_call.1} parent=1 // pred_check_branch
      %78 = sbr.rel (0) target = $region45
    $region44: #{tpu_custom_call.1} parent=1 // pred_region
      %79 = dma.done [#allocation6], 256
    $region45: #{tpu_custom_call.1} parent=1 // pred_fallthru
      _
    // Predicated region
    $region46: #{tpu_custom_call.1} parent=1 // pred_check
      _
    $region47: #{tpu_custom_call.1} parent=1 // pred_check_branch
      %81 = sbr.rel (0) target = $region49
    $region48: #{tpu_custom_call.1} parent=1 // pred_region
      %82 = dma.done [#allocation9], 256
    $region49: #{tpu_custom_call.1} parent=1 // pred_fallthru
      _
    %v83 = vld [vmem:[#allocation2] sm:$0xff]
    %v84 = vld [vmem:[#allocation2 + $0x8] sm:$0xff]
    %v85 = vld [vmem:[#allocation5] sm:$0xff]
    %vm86 = vcmask 130048
    %v88 = vsel %vm86, %v85, 0
    %90 = vmatprep.subr.mxu0 0.0
    %91 = vmatpush1.msra.mxu0 0.0
    %92 = vmatprep.subr.mxu0 0.0
    %93 = vmatpush1.msra.mxu0 0.0
    %94 = vmatprep.subr.mxu0 0.0
    %95 = vmatpush1.msra.mxu0 0.0
    %96 = vmatprep.subr.mxu0 0.0
    %97 = vmatpush1.msra.mxu0 0.0
    %98 = vmatprep.subr.mxu0 0.0
    %99 = vmatpush1.msra.mxu0 0.0
    %100 = vmatprep.subr.mxu0 0.0
    %101 = vmatpush1.msra.mxu0 0.0
    %102 = vmatprep.subr.mxu0 0.0
    %103 = vmatpush1.msra.mxu0 0.0
    %104 = vmatprep.subr.mxu0 0.0
    %105 = vmatpush1.msra.mxu0 0.0
    %106 = vmatprep.subr.mxu0 0.0
    %107 = vmatpush1.msra.mxu0 0.0
    %108 = vmatprep.subr.mxu0 0.0
    %109 = vmatpush1.msra.mxu0 0.0
    %110 = vmatprep.subr.mxu0 0.0
    %111 = vmatpush1.msra.mxu0 0.0
    %112 = vmatprep.subr.mxu0 0.0
    %113 = vmatpush1.msra.mxu0 0.0
    %114 = vmatprep.subr.mxu0 0.0
    %115 = vmatpush1.msra.mxu0 0.0
    %116 = vmatprep.subr.mxu0 0.0
    %117 = vmatpush1.msra.mxu0 0.0
    %118 = vmatprep.subr.mxu0 0.0
    %119 = vmatpush1.msra.mxu0 %v84
    %120 = vmatprep.subr.mxu0 0.0
    %121 = vmatpush1.msra.mxu0 %v83
    %122 = vmatprep.subr.mxu0 0.0
    %123 = vmatpush2.msra.mxu0 0.0
    %124 = vmatprep.subr.mxu0 0.0
    %125 = vmatpush2.msra.mxu0 0.0
    %126 = vmatprep.subr.mxu0 0.0
    %127 = vmatpush2.msra.mxu0 0.0
    %128 = vmatprep.subr.mxu0 0.0
    %129 = vmatpush2.msra.mxu0 0.0
    %130 = vmatprep.subr.mxu0 0.0
    %131 = vmatpush2.msra.mxu0 0.0
    %132 = vmatprep.subr.mxu0 0.0
    %133 = vmatpush2.msra.mxu0 0.0
    %134 = vmatprep.subr.mxu0 0.0
    %135 = vmatpush2.msra.mxu0 0.0
    %136 = vmatprep.subr.mxu0 0.0
    %137 = vmatpush2.msra.mxu0 0.0
    %138 = vmatprep.subr.mxu0 0.0
    %139 = vmatpush2.msra.mxu0 0.0
    %140 = vmatprep.subr.mxu0 0.0
    %141 = vmatpush2.msra.mxu0 0.0
    %142 = vmatprep.subr.mxu0 0.0
    %143 = vmatpush2.msra.mxu0 0.0
    %144 = vmatprep.subr.mxu0 0.0
    %145 = vmatpush2.msra.mxu0 0.0
    %146 = vmatprep.subr.mxu0 0.0
    %147 = vmatpush2.msra.mxu0 0.0
    %148 = vmatprep.subr.mxu0 0.0
    %149 = vmatpush2.msra.mxu0 0.0
    %150 = vmatprep.subr.mxu0 0.0
    %151 = vmatpush2.msra.mxu0 0.0
    %152 = vmatprep.subr.mxu0 0.0
    %153 = vmatpush2.msra.mxu0 0.0
    %154 = vmatprep.mubr.f32.mxu0 0.0
    %155 = vmatmul.mubr.f32.gmra.mxu0 %v88
    %v156 = vpop.f32.mrf.mxu0
    %v157 = vadd.f32 0.0, %v156
    %v158 = vpop.f32.mrf.mxu0
    %159 = vdwg.mxu0
    %v160 = vld [vmem:[#allocation7] sm:$0xff]
    %v161 = vld [vmem:[#allocation7 + $0x8] sm:$0xff]
    %v162 = vld [vmem:[%s3] sm:$0xff]
    %v163 = vld [vmem:[%s3 + $0x8] sm:$0xff]
    %v164 = vld [vmem:[%s3 + $0x10] sm:$0xff]
    %165 = vrot.lane.b32.xlu0 %v157, 1
    %v166 = vpop.permute.xlu0 %165
    %v168 = vsel %vm86, %v160, 0
    %v171 = vsel %vm86, %v161, 0
    %173 = vmatprep.subr.mxu0 0.0
    %174 = vmatpush1.msra.mxu0 0.0
    %175 = vmatprep.subr.mxu0 0.0
    %176 = vmatpush1.msra.mxu0 0.0
    %177 = vmatprep.subr.mxu0 0.0
    %178 = vmatpush1.msra.mxu0 0.0
    %179 = vmatprep.subr.mxu0 0.0
    %180 = vmatpush1.msra.mxu0 0.0
    %181 = vmatprep.subr.mxu0 0.0
    %182 = vmatpush1.msra.mxu0 0.0
    %183 = vmatprep.subr.mxu0 0.0
    %184 = vmatpush1.msra.mxu0 0.0
    %185 = vmatprep.subr.mxu0 0.0
    %186 = vmatpush1.msra.mxu0 0.0
    %187 = vmatprep.subr.mxu0 0.0
    %188 = vmatpush1.msra.mxu0 0.0
    %189 = vmatprep.subr.mxu0 0.0
    %190 = vmatpush1.msra.mxu0 0.0
    %191 = vmatprep.subr.mxu0 0.0
    %192 = vmatpush1.msra.mxu0 0.0
    %193 = vmatprep.subr.mxu0 0.0
    %194 = vmatpush1.msra.mxu0 0.0
    %195 = vmatprep.subr.mxu0 0.0
    %196 = vmatpush1.msra.mxu0 0.0
    %197 = vmatprep.subr.mxu0 0.0
    %198 = vmatpush1.msra.mxu0 0.0
    %199 = vmatprep.subr.mxu0 0.0
    %200 = vmatpush1.msra.mxu0 0.0
    %201 = vmatprep.subr.mxu0 0.0
    %202 = vmatpush1.msra.mxu0 %v157
    %203 = vmatprep.subr.mxu0 0.0
    %204 = vmatpush1.msra.mxu0 %v166
    %205 = vmatprep.subr.mxu0 0.0
    %206 = vmatpush2.msra.mxu0 0.0
    %207 = vmatprep.subr.mxu0 0.0
    %208 = vmatpush2.msra.mxu0 0.0
    %209 = vmatprep.subr.mxu0 0.0
    %210 = vmatpush2.msra.mxu0 0.0
    %211 = vmatprep.subr.mxu0 0.0
    %212 = vmatpush2.msra.mxu0 0.0
    %213 = vmatprep.subr.mxu0 0.0
    %214 = vmatpush2.msra.mxu0 0.0
    %215 = vmatprep.subr.mxu0 0.0
    %216 = vmatpush2.msra.mxu0 0.0
    %217 = vmatprep.subr.mxu0 0.0
    %218 = vmatpush2.msra.mxu0 0.0
    %219 = vmatprep.subr.mxu0 0.0
    %220 = vmatpush2.msra.mxu0 0.0
    %221 = vmatprep.subr.mxu0 0.0
    %222 = vmatpush2.msra.mxu0 0.0
    %223 = vmatprep.subr.mxu0 0.0
    %224 = vmatpush2.msra.mxu0 0.0
    %225 = vmatprep.subr.mxu0 0.0
    %226 = vmatpush2.msra.mxu0 0.0
    %227 = vmatprep.subr.mxu0 0.0
    %228 = vmatpush2.msra.mxu0 0.0
    %229 = vmatprep.subr.mxu0 0.0
    %230 = vmatpush2.msra.mxu0 0.0
    %231 = vmatprep.subr.mxu0 0.0
    %232 = vmatpush2.msra.mxu0 0.0
    %233 = vmatprep.subr.mxu0 0.0
    %234 = vmatpush2.msra.mxu0 0.0
    %235 = vmatprep.subr.mxu0 0.0
    %236 = vmatpush2.msra.mxu0 0.0
    %237 = vmatprep.mubr.f32.mxu0 0.0
    %238 = vmatmul.mubr.f32.gmra.mxu0 %v168
    %v239 = vpop.f32.mrf.mxu0
    %v240 = vadd.f32 0.0, %v239
    %v241 = vpop.f32.mrf.mxu0
    %242 = vmatprep.mubr.f32.mxu0 0.0
    %243 = vmatmul.mubr.f32.gmra.mxu0 %v171
    %v244 = vpop.f32.mrf.mxu0
    %v245 = vadd.f32 0.0, %v244
    %v246 = vpop.f32.mrf.mxu0
    %247 = vdwg.mxu0
    %v248 = vtanh.pop %v240
    %v249 = vtanh.pop %v245
    %v250 = vmul.f32 %v249, 0.5
    %v251 = vadd.f32 %v250, 0.5
    %v252 = vmul.f32 %v248, %v251
    %vm253 = vcmask 64512
    %v255 = vsel %vm253, %v162, 0
    %v258 = vsel %vm253, %v163, 0
    %v261 = vsel %vm253, %v164, 0
    %263 = vmatprep.subr.mxu0 0.0
    %264 = vmatpush1.msra.mxu0 0.0
    %265 = vmatprep.subr.mxu0 0.0
    %266 = vmatpush1.msra.mxu0 0.0
    %267 = vmatprep.subr.mxu0 0.0
    %268 = vmatpush1.msra.mxu0 0.0
    %269 = vmatprep.subr.mxu0 0.0
    %270 = vmatpush1.msra.mxu0 0.0
    %271 = vmatprep.subr.mxu0 0.0
    %272 = vmatpush1.msra.mxu0 0.0
    %273 = vmatprep.subr.mxu0 0.0
    %274 = vmatpush1.msra.mxu0 0.0
    %275 = vmatprep.subr.mxu0 0.0
    %276 = vmatpush1.msra.mxu0 0.0
    %277 = vmatprep.subr.mxu0 0.0
    %278 = vmatpush1.msra.mxu0 0.0
    %279 = vmatprep.subr.mxu0 0.0
    %280 = vmatpush1.msra.mxu0 0.0
    %281 = vmatprep.subr.mxu0 0.0
    %282 = vmatpush1.msra.mxu0 0.0
    %283 = vmatprep.subr.mxu0 0.0
    %284 = vmatpush1.msra.mxu0 0.0
    %285 = vmatprep.subr.mxu0 0.0
    %286 = vmatpush1.msra.mxu0 0.0
    %287 = vmatprep.subr.mxu0 0.0
    %288 = vmatpush1.msra.mxu0 0.0
    %289 = vmatprep.subr.mxu0 0.0
    %290 = vmatpush1.msra.mxu0 0.0
    %291 = vmatprep.subr.mxu0 0.0
    %292 = vmatpush1.msra.mxu0 0.0
    %293 = vmatprep.subr.mxu0 0.0
    %294 = vmatpush1.msra.mxu0 %v252
    %295 = vmatprep.subr.mxu0 0.0
    %296 = vmatpush2.msra.mxu0 0.0
    %297 = vmatprep.subr.mxu0 0.0
    %298 = vmatpush2.msra.mxu0 0.0
    %299 = vmatprep.subr.mxu0 0.0
    %300 = vmatpush2.msra.mxu0 0.0
    %301 = vmatprep.subr.mxu0 0.0
    %302 = vmatpush2.msra.mxu0 0.0
    %303 = vmatprep.subr.mxu0 0.0
    %304 = vmatpush2.msra.mxu0 0.0
    %305 = vmatprep.subr.mxu0 0.0
    %306 = vmatpush2.msra.mxu0 0.0
    %307 = vmatprep.subr.mxu0 0.0
    %308 = vmatpush2.msra.mxu0 0.0
    %309 = vmatprep.subr.mxu0 0.0
    %310 = vmatpush2.msra.mxu0 0.0
    %311 = vmatprep.subr.mxu0 0.0
    %312 = vmatpush2.msra.mxu0 0.0
    %313 = vmatprep.subr.mxu0 0.0
    %314 = vmatpush2.msra.mxu0 0.0
    %315 = vmatprep.subr.mxu0 0.0
    %316 = vmatpush2.msra.mxu0 0.0
    %317 = vmatprep.subr.mxu0 0.0
    %318 = vmatpush2.msra.mxu0 0.0
    %319 = vmatprep.subr.mxu0 0.0
    %320 = vmatpush2.msra.mxu0 0.0
    %321 = vmatprep.subr.mxu0 0.0
    %322 = vmatpush2.msra.mxu0 0.0
    %323 = vmatprep.subr.mxu0 0.0
    %324 = vmatpush2.msra.mxu0 0.0
    %325 = vmatprep.subr.mxu0 0.0
    %326 = vmatpush2.msra.mxu0 0.0
    %327 = vmatprep.mubr.f32.mxu0 0.0
    %328 = vmatmul.mubr.f32.gmra.mxu0 %v255
    %v329 = vpop.f32.mrf.mxu0
    %v330 = vadd.f32 0.0, %v329
    %v331 = vpop.f32.mrf.mxu0
    %332 = vmatprep.mubr.f32.mxu0 0.0
    %333 = vmatmul.mubr.f32.gmra.mxu0 %v258
    %v334 = vpop.f32.mrf.mxu0
    %v335 = vadd.f32 0.0, %v334
    %v336 = vpop.f32.mrf.mxu0
    %337 = vmatprep.mubr.f32.mxu0 0.0
    %338 = vmatmul.mubr.f32.gmra.mxu0 %v261
    %v339 = vpop.f32.mrf.mxu0
    %v340 = vadd.f32 0.0, %v339
    %v341 = vpop.f32.mrf.mxu0
    %342 = vdwg.mxu0
    %v343 = vadd.f32 %v330, %v157
    %344 = vrot.lane.b32.xlu0 %v343, 2
    %v345 = vpop.permute.xlu0 %344
    %346 = vrot.lane.b32.xlu0 %v160, 112
    %v347 = vpop.permute.xlu0 %346
    %348 = vrot.lane.b32.xlu0 %v161, 112
    %v349 = vpop.permute.xlu0 %348
    %v350 = vsel %vm86, %v347, 0
    %v352 = vsel %vm86, %v349, 0
    %354 = vmatprep.subr.mxu0 0.0
    %355 = vmatpush1.msra.mxu0 0.0
    %356 = vmatprep.subr.mxu0 0.0
    %357 = vmatpush1.msra.mxu0 0.0
    %358 = vmatprep.subr.mxu0 0.0
    %359 = vmatpush1.msra.mxu0 0.0
    %360 = vmatprep.subr.mxu0 0.0
    %361 = vmatpush1.msra.mxu0 0.0
    %362 = vmatprep.subr.mxu0 0.0
    %363 = vmatpush1.msra.mxu0 0.0
    %364 = vmatprep.subr.mxu0 0.0
    %365 = vmatpush1.msra.mxu0 0.0
    %366 = vmatprep.subr.mxu0 0.0
    %367 = vmatpush1.msra.mxu0 0.0
    %368 = vmatprep.subr.mxu0 0.0
    %369 = vmatpush1.msra.mxu0 0.0
    %370 = vmatprep.subr.mxu0 0.0
    %371 = vmatpush1.msra.mxu0 0.0
    %372 = vmatprep.subr.mxu0 0.0
    %373 = vmatpush1.msra.mxu0 0.0
    %374 = vmatprep.subr.mxu0 0.0
    %375 = vmatpush1.msra.mxu0 0.0
    %376 = vmatprep.subr.mxu0 0.0
    %377 = vmatpush1.msra.mxu0 0.0
    %378 = vmatprep.subr.mxu0 0.0
    %379 = vmatpush1.msra.mxu0 0.0
    %380 = vmatprep.subr.mxu0 0.0
    %381 = vmatpush1.msra.mxu0 0.0
    %382 = vmatprep.subr.mxu0 0.0
    %383 = vmatpush1.msra.mxu0 %v343
    %384 = vmatprep.subr.mxu0 0.0
    %385 = vmatpush1.msra.mxu0 %v345
    %386 = vmatprep.subr.mxu0 0.0
    %387 = vmatpush2.msra.mxu0 0.0
    %388 = vmatprep.subr.mxu0 0.0
    %389 = vmatpush2.msra.mxu0 0.0
    %390 = vmatprep.subr.mxu0 0.0
    %391 = vmatpush2.msra.mxu0 0.0
    %392 = vmatprep.subr.mxu0 0.0
    %393 = vmatpush2.msra.mxu0 0.0
    %394 = vmatprep.subr.mxu0 0.0
    %395 = vmatpush2.msra.mxu0 0.0
    %396 = vmatprep.subr.mxu0 0.0
    %397 = vmatpush2.msra.mxu0 0.0
    %398 = vmatprep.subr.mxu0 0.0
    %399 = vmatpush2.msra.mxu0 0.0
    %400 = vmatprep.subr.mxu0 0.0
    %401 = vmatpush2.msra.mxu0 0.0
    %402 = vmatprep.subr.mxu0 0.0
    %403 = vmatpush2.msra.mxu0 0.0
    %404 = vmatprep.subr.mxu0 0.0
    %405 = vmatpush2.msra.mxu0 0.0
    %406 = vmatprep.subr.mxu0 0.0
    %407 = vmatpush2.msra.mxu0 0.0
    %408 = vmatprep.subr.mxu0 0.0
    %409 = vmatpush2.msra.mxu0 0.0
    %410 = vmatprep.subr.mxu0 0.0
    %411 = vmatpush2.msra.mxu0 0.0
    %412 = vmatprep.subr.mxu0 0.0
    %413 = vmatpush2.msra.mxu0 0.0
    %414 = vmatprep.subr.mxu0 0.0
    %415 = vmatpush2.msra.mxu0 0.0
    %416 = vmatprep.subr.mxu0 0.0
    %417 = vmatpush2.msra.mxu0 0.0
    %418 = vmatprep.mubr.f32.mxu0 0.0
    %419 = vmatmul.mubr.f32.gmra.mxu0 %v350
    %v420 = vpop.f32.mrf.mxu0
    %v421 = vadd.f32 0.0, %v420
    %v422 = vpop.f32.mrf.mxu0
    %423 = vmatprep.mubr.f32.mxu0 0.0
    %424 = vmatmul.mubr.f32.gmra.mxu0 %v352
    %v425 = vpop.f32.mrf.mxu0
    %v426 = vadd.f32 0.0, %v425
    %v427 = vpop.f32.mrf.mxu0
    %428 = vdwg.mxu0
    %v429 = vtanh.pop %v421
    %v430 = vtanh.pop %v426
    %v431 = vmul.f32 %v430, 0.5
    %v432 = vadd.f32 %v431, 0.5
    %v433 = vmul.f32 %v429, %v432
    %434 = vrot.lane.b32.xlu0 %v162, 120
    %v435 = vpop.permute.xlu0 %434
    %436 = vrot.lane.b32.xlu0 %v163, 120
    %v437 = vpop.permute.xlu0 %436
    %438 = vrot.lane.b32.xlu0 %v164, 120
    %v439 = vpop.permute.xlu0 %438
    %v440 = vsel %vm253, %v435, 0
    %v442 = vsel %vm253, %v437, 0
    %v444 = vsel %vm253, %v439, 0
    %446 = vmatprep.subr.mxu0 0.0
    %447 = vmatpush1.msra.mxu0 0.0
    %448 = vmatprep.subr.mxu0 0.0
    %449 = vmatpush1.msra.mxu0 0.0
    %450 = vmatprep.subr.mxu0 0.0
    %451 = vmatpush1.msra.mxu0 0.0
    %452 = vmatprep.subr.mxu0 0.0
    %453 = vmatpush1.msra.mxu0 0.0
    %454 = vmatprep.subr.mxu0 0.0
    %455 = vmatpush1.msra.mxu0 0.0
    %456 = vmatprep.subr.mxu0 0.0
    %457 = vmatpush1.msra.mxu0 0.0
    %458 = vmatprep.subr.mxu0 0.0
    %459 = vmatpush1.msra.mxu0 0.0
    %460 = vmatprep.subr.mxu0 0.0
    %461 = vmatpush1.msra.mxu0 0.0
    %462 = vmatprep.subr.mxu0 0.0
    %463 = vmatpush1.msra.mxu0 0.0
    %464 = vmatprep.subr.mxu0 0.0
    %465 = vmatpush1.msra.mxu0 0.0
    %466 = vmatprep.subr.mxu0 0.0
    %467 = vmatpush1.msra.mxu0 0.0
    %468 = vmatprep.subr.mxu0 0.0
    %469 = vmatpush1.msra.mxu0 0.0
    %470 = vmatprep.subr.mxu0 0.0
    %471 = vmatpush1.msra.mxu0 0.0
    %472 = vmatprep.subr.mxu0 0.0
    %473 = vmatpush1.msra.mxu0 0.0
    %474 = vmatprep.subr.mxu0 0.0
    %475 = vmatpush1.msra.mxu0 0.0
    %476 = vmatprep.subr.mxu0 0.0
    %477 = vmatpush1.msra.mxu0 %v433
    %478 = vmatprep.subr.mxu0 0.0
    %479 = vmatpush2.msra.mxu0 0.0
    %480 = vmatprep.subr.mxu0 0.0
    %481 = vmatpush2.msra.mxu0 0.0
    %482 = vmatprep.subr.mxu0 0.0
    %483 = vmatpush2.msra.mxu0 0.0
    %484 = vmatprep.subr.mxu0 0.0
    %485 = vmatpush2.msra.mxu0 0.0
    %486 = vmatprep.subr.mxu0 0.0
    %487 = vmatpush2.msra.mxu0 0.0
    %488 = vmatprep.subr.mxu0 0.0
    %489 = vmatpush2.msra.mxu0 0.0
    %490 = vmatprep.subr.mxu0 0.0
    %491 = vmatpush2.msra.mxu0 0.0
    %492 = vmatprep.subr.mxu0 0.0
    %493 = vmatpush2.msra.mxu0 0.0
    %494 = vmatprep.subr.mxu0 0.0
    %495 = vmatpush2.msra.mxu0 0.0
    %496 = vmatprep.subr.mxu0 0.0
    %497 = vmatpush2.msra.mxu0 0.0
    %498 = vmatprep.subr.mxu0 0.0
    %499 = vmatpush2.msra.mxu0 0.0
    %500 = vmatprep.subr.mxu0 0.0
    %501 = vmatpush2.msra.mxu0 0.0
    %502 = vmatprep.subr.mxu0 0.0
    %503 = vmatpush2.msra.mxu0 0.0
    %504 = vmatprep.subr.mxu0 0.0
    %505 = vmatpush2.msra.mxu0 0.0
    %506 = vmatprep.subr.mxu0 0.0
    %507 = vmatpush2.msra.mxu0 0.0
    %508 = vmatprep.subr.mxu0 0.0
    %509 = vmatpush2.msra.mxu0 0.0
    %510 = vmatprep.mubr.f32.mxu0 0.0
    %511 = vmatmul.mubr.f32.gmra.mxu0 %v440
    %v512 = vpop.f32.mrf.mxu0
    %v513 = vadd.f32 0.0, %v512
    %v514 = vpop.f32.mrf.mxu0
    %515 = vmatprep.mubr.f32.mxu0 0.0
    %516 = vmatmul.mubr.f32.gmra.mxu0 %v442
    %v517 = vpop.f32.mrf.mxu0
    %v518 = vadd.f32 0.0, %v517
    %v519 = vpop.f32.mrf.mxu0
    %520 = vmatprep.mubr.f32.mxu0 0.0
    %521 = vmatmul.mubr.f32.gmra.mxu0 %v444
    %v522 = vpop.f32.mrf.mxu0
    %v523 = vadd.f32 0.0, %v522
    %v524 = vpop.f32.mrf.mxu0
    %525 = vdwg.mxu0
    %v526 = vadd.f32 %v513, %v343
    %v527 = vadd.f32 %v335, %v518
    %v528 = vadd.f32 %v340, %v523
    %529 = vrot.lane.b32.xlu0 %v526, 4
    %v530 = vpop.permute.xlu0 %529
    %531 = vrot.lane.b32.xlu0 %v160, 96
    %v532 = vpop.permute.xlu0 %531
    %533 = vrot.lane.b32.xlu0 %v161, 96
    %v534 = vpop.permute.xlu0 %533
    %v535 = vsel %vm86, %v532, 0
    %v537 = vsel %vm86, %v534, 0
    %539 = vmatprep.subr.mxu0 0.0
    %540 = vmatpush1.msra.mxu0 0.0
    %541 = vmatprep.subr.mxu0 0.0
    %542 = vmatpush1.msra.mxu0 0.0
    %543 = vmatprep.subr.mxu0 0.0
    %544 = vmatpush1.msra.mxu0 0.0
    %545 = vmatprep.subr.mxu0 0.0
    %546 = vmatpush1.msra.mxu0 0.0
    %547 = vmatprep.subr.mxu0 0.0
    %548 = vmatpush1.msra.mxu0 0.0
    %549 = vmatprep.subr.mxu0 0.0
    %550 = vmatpush1.msra.mxu0 0.0
    %551 = vmatprep.subr.mxu0 0.0
    %552 = vmatpush1.msra.mxu0 0.0
    %553 = vmatprep.subr.mxu0 0.0
    %554 = vmatpush1.msra.mxu0 0.0
    %555 = vmatprep.subr.mxu0 0.0
    %556 = vmatpush1.msra.mxu0 0.0
    %557 = vmatprep.subr.mxu0 0.0
    %558 = vmatpush1.msra.mxu0 0.0
    %559 = vmatprep.subr.mxu0 0.0
    %560 = vmatpush1.msra.mxu0 0.0
    %561 = vmatprep.subr.mxu0 0.0
    %562 = vmatpush1.msra.mxu0 0.0
    %563 = vmatprep.subr.mxu0 0.0
    %564 = vmatpush1.msra.mxu0 0.0
    %565 = vmatprep.subr.mxu0 0.0
    %566 = vmatpush1.msra.mxu0 0.0
    %567 = vmatprep.subr.mxu0 0.0
    %568 = vmatpush1.msra.mxu0 %v526
    %569 = vmatprep.subr.mxu0 0.0
    %570 = vmatpush1.msra.mxu0 %v530
    %571 = vmatprep.subr.mxu0 0.0
    %572 = vmatpush2.msra.mxu0 0.0
    %573 = vmatprep.subr.mxu0 0.0
    %574 = vmatpush2.msra.mxu0 0.0
    %575 = vmatprep.subr.mxu0 0.0
    %576 = vmatpush2.msra.mxu0 0.0
    %577 = vmatprep.subr.mxu0 0.0
    %578 = vmatpush2.msra.mxu0 0.0
    %579 = vmatprep.subr.mxu0 0.0
    %580 = vmatpush2.msra.mxu0 0.0
    %581 = vmatprep.subr.mxu0 0.0
    %582 = vmatpush2.msra.mxu0 0.0
    %583 = vmatprep.subr.mxu0 0.0
    %584 = vmatpush2.msra.mxu0 0.0
    %585 = vmatprep.subr.mxu0 0.0
    %586 = vmatpush2.msra.mxu0 0.0
    %587 = vmatprep.subr.mxu0 0.0
    %588 = vmatpush2.msra.mxu0 0.0
    %589 = vmatprep.subr.mxu0 0.0
    %590 = vmatpush2.msra.mxu0 0.0
    %591 = vmatprep.subr.mxu0 0.0
    %592 = vmatpush2.msra.mxu0 0.0
    %593 = vmatprep.subr.mxu0 0.0
    %594 = vmatpush2.msra.mxu0 0.0
    %595 = vmatprep.subr.mxu0 0.0
    %596 = vmatpush2.msra.mxu0 0.0
    %597 = vmatprep.subr.mxu0 0.0
    %598 = vmatpush2.msra.mxu0 0.0
    %599 = vmatprep.subr.mxu0 0.0
    %600 = vmatpush2.msra.mxu0 0.0
    %601 = vmatprep.subr.mxu0 0.0
    %602 = vmatpush2.msra.mxu0 0.0
    %603 = vmatprep.mubr.f32.mxu0 0.0
    %604 = vmatmul.mubr.f32.gmra.mxu0 %v535
    %v605 = vpop.f32.mrf.mxu0
    %v606 = vadd.f32 0.0, %v605
    %v607 = vpop.f32.mrf.mxu0
    %608 = vmatprep.mubr.f32.mxu0 0.0
    %609 = vmatmul.mubr.f32.gmra.mxu0 %v537
    %v610 = vpop.f32.mrf.mxu0
    %v611 = vadd.f32 0.0, %v610
    %v612 = vpop.f32.mrf.mxu0
    %613 = vdwg.mxu0
    %v614 = vtanh.pop %v606
    %v615 = vtanh.pop %v611
    %v616 = vmul.f32 %v615, 0.5
    %v617 = vadd.f32 %v616, 0.5
    %v618 = vmul.f32 %v614, %v617
    %619 = vrot.lane.b32.xlu0 %v162, 112
    %v620 = vpop.permute.xlu0 %619
    %621 = vrot.lane.b32.xlu0 %v163, 112
    %v622 = vpop.permute.xlu0 %621
    %623 = vrot.lane.b32.xlu0 %v164, 112
    %v624 = vpop.permute.xlu0 %623
    %v625 = vsel %vm253, %v620, 0
    %v627 = vsel %vm253, %v622, 0
    %v629 = vsel %vm253, %v624, 0
    %631 = vmatprep.subr.mxu0 0.0
    %632 = vmatpush1.msra.mxu0 0.0
    %633 = vmatprep.subr.mxu0 0.0
    %634 = vmatpush1.msra.mxu0 0.0
    %635 = vmatprep.subr.mxu0 0.0
    %636 = vmatpush1.msra.mxu0 0.0
    %637 = vmatprep.subr.mxu0 0.0
    %638 = vmatpush1.msra.mxu0 0.0
    %639 = vmatprep.subr.mxu0 0.0
    %640 = vmatpush1.msra.mxu0 0.0
    %641 = vmatprep.subr.mxu0 0.0
    %642 = vmatpush1.msra.mxu0 0.0
    %643 = vmatprep.subr.mxu0 0.0
    %644 = vmatpush1.msra.mxu0 0.0
    %645 = vmatprep.subr.mxu0 0.0
    %646 = vmatpush1.msra.mxu0 0.0
    %647 = vmatprep.subr.mxu0 0.0
    %648 = vmatpush1.msra.mxu0 0.0
    %649 = vmatprep.subr.mxu0 0.0
    %650 = vmatpush1.msra.mxu0 0.0
    %651 = vmatprep.subr.mxu0 0.0
    %652 = vmatpush1.msra.mxu0 0.0
    %653 = vmatprep.subr.mxu0 0.0
    %654 = vmatpush1.msra.mxu0 0.0
    %655 = vmatprep.subr.mxu0 0.0
    %656 = vmatpush1.msra.mxu0 0.0
    %657 = vmatprep.subr.mxu0 0.0
    %658 = vmatpush1.msra.mxu0 0.0
    %659 = vmatprep.subr.mxu0 0.0
    %660 = vmatpush1.msra.mxu0 0.0
    %661 = vmatprep.subr.mxu0 0.0
    %662 = vmatpush1.msra.mxu0 %v618
    %663 = vmatprep.subr.mxu0 0.0
    %664 = vmatpush2.msra.mxu0 0.0
    %665 = vmatprep.subr.mxu0 0.0
    %666 = vmatpush2.msra.mxu0 0.0
    %667 = vmatprep.subr.mxu0 0.0
    %668 = vmatpush2.msra.mxu0 0.0
    %669 = vmatprep.subr.mxu0 0.0
    %670 = vmatpush2.msra.mxu0 0.0
    %671 = vmatprep.subr.mxu0 0.0
    %672 = vmatpush2.msra.mxu0 0.0
    %673 = vmatprep.subr.mxu0 0.0
    %674 = vmatpush2.msra.mxu0 0.0
    %675 = vmatprep.subr.mxu0 0.0
    %676 = vmatpush2.msra.mxu0 0.0
    %677 = vmatprep.subr.mxu0 0.0
    %678 = vmatpush2.msra.mxu0 0.0
    %679 = vmatprep.subr.mxu0 0.0
    %680 = vmatpush2.msra.mxu0 0.0
    %681 = vmatprep.subr.mxu0 0.0
    %682 = vmatpush2.msra.mxu0 0.0
    %683 = vmatprep.subr.mxu0 0.0
    %684 = vmatpush2.msra.mxu0 0.0
    %685 = vmatprep.subr.mxu0 0.0
    %686 = vmatpush2.msra.mxu0 0.0
    %687 = vmatprep.subr.mxu0 0.0
    %688 = vmatpush2.msra.mxu0 0.0
    %689 = vmatprep.subr.mxu0 0.0
    %690 = vmatpush2.msra.mxu0 0.0
    %691 = vmatprep.subr.mxu0 0.0
    %692 = vmatpush2.msra.mxu0 0.0
    %693 = vmatprep.subr.mxu0 0.0
    %694 = vmatpush2.msra.mxu0 0.0
    %695 = vmatprep.mubr.f32.mxu0 0.0
    %696 = vmatmul.mubr.f32.gmra.mxu0 %v625
    %v697 = vpop.f32.mrf.mxu0
    %v698 = vadd.f32 0.0, %v697
    %v699 = vpop.f32.mrf.mxu0
    %700 = vmatprep.mubr.f32.mxu0 0.0
    %701 = vmatmul.mubr.f32.gmra.mxu0 %v627
    %v702 = vpop.f32.mrf.mxu0
    %v703 = vadd.f32 0.0, %v702
    %v704 = vpop.f32.mrf.mxu0
    %705 = vmatprep.mubr.f32.mxu0 0.0
    %706 = vmatmul.mubr.f32.gmra.mxu0 %v629
    %v707 = vpop.f32.mrf.mxu0
    %v708 = vadd.f32 0.0, %v707
    %v709 = vpop.f32.mrf.mxu0
    %710 = vdwg.mxu0
    %v711 = vadd.f32 %v698, %v526
    %v712 = vadd.f32 %v527, %v703
    %v713 = vadd.f32 %v528, %v708
    %714 = vrot.lane.b32.xlu0 %v711, 1
    %v715 = vpop.permute.xlu0 %714
    %716 = vrot.lane.b32.xlu0 %v160, 80
    %v717 = vpop.permute.xlu0 %716
    %718 = vrot.lane.b32.xlu0 %v161, 80
    %v719 = vpop.permute.xlu0 %718
    %v720 = vsel %vm86, %v717, 0
    %v722 = vsel %vm86, %v719, 0
    %724 = vmatprep.subr.mxu0 0.0
    %725 = vmatpush1.msra.mxu0 0.0
    %726 = vmatprep.subr.mxu0 0.0
    %727 = vmatpush1.msra.mxu0 0.0
    %728 = vmatprep.subr.mxu0 0.0
    %729 = vmatpush1.msra.mxu0 0.0
    %730 = vmatprep.subr.mxu0 0.0
    %731 = vmatpush1.msra.mxu0 0.0
    %732 = vmatprep.subr.mxu0 0.0
    %733 = vmatpush1.msra.mxu0 0.0
    %734 = vmatprep.subr.mxu0 0.0
    %735 = vmatpush1.msra.mxu0 0.0
    %736 = vmatprep.subr.mxu0 0.0
    %737 = vmatpush1.msra.mxu0 0.0
    %738 = vmatprep.subr.mxu0 0.0
    %739 = vmatpush1.msra.mxu0 0.0
    %740 = vmatprep.subr.mxu0 0.0
    %741 = vmatpush1.msra.mxu0 0.0
    %742 = vmatprep.subr.mxu0 0.0
    %743 = vmatpush1.msra.mxu0 0.0
    %744 = vmatprep.subr.mxu0 0.0
    %745 = vmatpush1.msra.mxu0 0.0
    %746 = vmatprep.subr.mxu0 0.0
    %747 = vmatpush1.msra.mxu0 0.0
    %748 = vmatprep.subr.mxu0 0.0
    %749 = vmatpush1.msra.mxu0 0.0
    %750 = vmatprep.subr.mxu0 0.0
    %751 = vmatpush1.msra.mxu0 0.0
    %752 = vmatprep.subr.mxu0 0.0
    %753 = vmatpush1.msra.mxu0 %v711
    %754 = vmatprep.subr.mxu0 0.0
    %755 = vmatpush1.msra.mxu0 %v715
    %756 = vmatprep.subr.mxu0 0.0
    %757 = vmatpush2.msra.mxu0 0.0
    %758 = vmatprep.subr.mxu0 0.0
    %759 = vmatpush2.msra.mxu0 0.0
    %760 = vmatprep.subr.mxu0 0.0
    %761 = vmatpush2.msra.mxu0 0.0
    %762 = vmatprep.subr.mxu0 0.0
    %763 = vmatpush2.msra.mxu0 0.0
    %764 = vmatprep.subr.mxu0 0.0
    %765 = vmatpush2.msra.mxu0 0.0
    %766 = vmatprep.subr.mxu0 0.0
    %767 = vmatpush2.msra.mxu0 0.0
    %768 = vmatprep.subr.mxu0 0.0
    %769 = vmatpush2.msra.mxu0 0.0
    %770 = vmatprep.subr.mxu0 0.0
    %771 = vmatpush2.msra.mxu0 0.0
    %772 = vmatprep.subr.mxu0 0.0
    %773 = vmatpush2.msra.mxu0 0.0
    %774 = vmatprep.subr.mxu0 0.0
    %775 = vmatpush2.msra.mxu0 0.0
    %776 = vmatprep.subr.mxu0 0.0
    %777 = vmatpush2.msra.mxu0 0.0
    %778 = vmatprep.subr.mxu0 0.0
    %779 = vmatpush2.msra.mxu0 0.0
    %780 = vmatprep.subr.mxu0 0.0
    %781 = vmatpush2.msra.mxu0 0.0
    %782 = vmatprep.subr.mxu0 0.0
    %783 = vmatpush2.msra.mxu0 0.0
    %784 = vmatprep.subr.mxu0 0.0
    %785 = vmatpush2.msra.mxu0 0.0
    %786 = vmatprep.subr.mxu0 0.0
    %787 = vmatpush2.msra.mxu0 0.0
    %788 = vmatprep.mubr.f32.mxu0 0.0
    %789 = vmatmul.mubr.f32.gmra.mxu0 %v720
    %v790 = vpop.f32.mrf.mxu0
    %v791 = vadd.f32 0.0, %v790
    %v792 = vpop.f32.mrf.mxu0
    %793 = vmatprep.mubr.f32.mxu0 0.0
    %794 = vmatmul.mubr.f32.gmra.mxu0 %v722
    %v795 = vpop.f32.mrf.mxu0
    %v796 = vadd.f32 0.0, %v795
    %v797 = vpop.f32.mrf.mxu0
    %798 = vdwg.mxu0
    %v799 = vtanh.pop %v791
    %v800 = vtanh.pop %v796
    %v801 = vmul.f32 %v800, 0.5
    %v802 = vadd.f32 %v801, 0.5
    %v803 = vmul.f32 %v799, %v802
    %804 = vrot.lane.b32.xlu0 %v162, 104
    %v805 = vpop.permute.xlu0 %804
    %806 = vrot.lane.b32.xlu0 %v163, 104
    %v807 = vpop.permute.xlu0 %806
    %808 = vrot.lane.b32.xlu0 %v164, 104
    %v809 = vpop.permute.xlu0 %808
    %v810 = vsel %vm253, %v805, 0
    %v812 = vsel %vm253, %v807, 0
    %v814 = vsel %vm253, %v809, 0
    %816 = vmatprep.subr.mxu0 0.0
    %817 = vmatpush1.msra.mxu0 0.0
    %818 = vmatprep.subr.mxu0 0.0
    %819 = vmatpush1.msra.mxu0 0.0
    %820 = vmatprep.subr.mxu0 0.0
    %821 = vmatpush1.msra.mxu0 0.0
    %822 = vmatprep.subr.mxu0 0.0
    %823 = vmatpush1.msra.mxu0 0.0
    %824 = vmatprep.subr.mxu0 0.0
    %825 = vmatpush1.msra.mxu0 0.0
    %826 = vmatprep.subr.mxu0 0.0
    %827 = vmatpush1.msra.mxu0 0.0
    %828 = vmatprep.subr.mxu0 0.0
    %829 = vmatpush1.msra.mxu0 0.0
    %830 = vmatprep.subr.mxu0 0.0
    %831 = vmatpush1.msra.mxu0 0.0
    %832 = vmatprep.subr.mxu0 0.0
    %833 = vmatpush1.msra.mxu0 0.0
    %834 = vmatprep.subr.mxu0 0.0
    %835 = vmatpush1.msra.mxu0 0.0
    %836 = vmatprep.subr.mxu0 0.0
    %837 = vmatpush1.msra.mxu0 0.0
    %838 = vmatprep.subr.mxu0 0.0
    %839 = vmatpush1.msra.mxu0 0.0
    %840 = vmatprep.subr.mxu0 0.0
    %841 = vmatpush1.msra.mxu0 0.0
    %842 = vmatprep.subr.mxu0 0.0
    %843 = vmatpush1.msra.mxu0 0.0
    %844 = vmatprep.subr.mxu0 0.0
    %845 = vmatpush1.msra.mxu0 0.0
    %846 = vmatprep.subr.mxu0 0.0
    %847 = vmatpush1.msra.mxu0 %v803
    %848 = vmatprep.subr.mxu0 0.0
    %849 = vmatpush2.msra.mxu0 0.0
    %850 = vmatprep.subr.mxu0 0.0
    %851 = vmatpush2.msra.mxu0 0.0
    %852 = vmatprep.subr.mxu0 0.0
    %853 = vmatpush2.msra.mxu0 0.0
    %854 = vmatprep.subr.mxu0 0.0
    %855 = vmatpush2.msra.mxu0 0.0
    %856 = vmatprep.subr.mxu0 0.0
    %857 = vmatpush2.msra.mxu0 0.0
    %858 = vmatprep.subr.mxu0 0.0
    %859 = vmatpush2.msra.mxu0 0.0
    %860 = vmatprep.subr.mxu0 0.0
    %861 = vmatpush2.msra.mxu0 0.0
    %862 = vmatprep.subr.mxu0 0.0
    %863 = vmatpush2.msra.mxu0 0.0
    %864 = vmatprep.subr.mxu0 0.0
    %865 = vmatpush2.msra.mxu0 0.0
    %866 = vmatprep.subr.mxu0 0.0
    %867 = vmatpush2.msra.mxu0 0.0
    %868 = vmatprep.subr.mxu0 0.0
    %869 = vmatpush2.msra.mxu0 0.0
    %870 = vmatprep.subr.mxu0 0.0
    %871 = vmatpush2.msra.mxu0 0.0
    %872 = vmatprep.subr.mxu0 0.0
    %873 = vmatpush2.msra.mxu0 0.0
    %874 = vmatprep.subr.mxu0 0.0
    %875 = vmatpush2.msra.mxu0 0.0
    %876 = vmatprep.subr.mxu0 0.0
    %877 = vmatpush2.msra.mxu0 0.0
    %878 = vmatprep.subr.mxu0 0.0
    %879 = vmatpush2.msra.mxu0 0.0
    %880 = vmatprep.mubr.f32.mxu0 0.0
    %881 = vmatmul.mubr.f32.gmra.mxu0 %v810
    %v882 = vpop.f32.mrf.mxu0
    %v883 = vadd.f32 0.0, %v882
    %v884 = vpop.f32.mrf.mxu0
    %885 = vmatprep.mubr.f32.mxu0 0.0
    %886 = vmatmul.mubr.f32.gmra.mxu0 %v812
    %v887 = vpop.f32.mrf.mxu0
    %v888 = vadd.f32 0.0, %v887
    %v889 = vpop.f32.mrf.mxu0
    %890 = vmatprep.mubr.f32.mxu0 0.0
    %891 = vmatmul.mubr.f32.gmra.mxu0 %v814
    %v892 = vpop.f32.mrf.mxu0
    %v893 = vadd.f32 0.0, %v892
    %v894 = vpop.f32.mrf.mxu0
    %895 = vdwg.mxu0
    %v896 = vadd.f32 %v883, %v711
    %v897 = vadd.f32 %v712, %v888
    %v898 = vadd.f32 %v713, %v893
    %899 = vrot.lane.b32.xlu0 %v896, 2
    %v900 = vpop.permute.xlu0 %899
    %901 = vrot.lane.b32.xlu0 %v160, 64
    %v902 = vpop.permute.xlu0 %901
    %903 = vrot.lane.b32.xlu0 %v161, 64
    %v904 = vpop.permute.xlu0 %903
    %v905 = vsel %vm86, %v902, 0
    %v907 = vsel %vm86, %v904, 0
    %909 = vmatprep.subr.mxu0 0.0
    %910 = vmatpush1.msra.mxu0 0.0
    %911 = vmatprep.subr.mxu0 0.0
    %912 = vmatpush1.msra.mxu0 0.0
    %913 = vmatprep.subr.mxu0 0.0
    %914 = vmatpush1.msra.mxu0 0.0
    %915 = vmatprep.subr.mxu0 0.0
    %916 = vmatpush1.msra.mxu0 0.0
    %917 = vmatprep.subr.mxu0 0.0
    %918 = vmatpush1.msra.mxu0 0.0
    %919 = vmatprep.subr.mxu0 0.0
    %920 = vmatpush1.msra.mxu0 0.0
    %921 = vmatprep.subr.mxu0 0.0
    %922 = vmatpush1.msra.mxu0 0.0
    %923 = vmatprep.subr.mxu0 0.0
    %924 = vmatpush1.msra.mxu0 0.0
    %925 = vmatprep.subr.mxu0 0.0
    %926 = vmatpush1.msra.mxu0 0.0
    %927 = vmatprep.subr.mxu0 0.0
    %928 = vmatpush1.msra.mxu0 0.0
    %929 = vmatprep.subr.mxu0 0.0
    %930 = vmatpush1.msra.mxu0 0.0
    %931 = vmatprep.subr.mxu0 0.0
    %932 = vmatpush1.msra.mxu0 0.0
    %933 = vmatprep.subr.mxu0 0.0
    %934 = vmatpush1.msra.mxu0 0.0
    %935 = vmatprep.subr.mxu0 0.0
    %936 = vmatpush1.msra.mxu0 0.0
    %937 = vmatprep.subr.mxu0 0.0
    %938 = vmatpush1.msra.mxu0 %v896
    %939 = vmatprep.subr.mxu0 0.0
    %940 = vmatpush1.msra.mxu0 %v900
    %941 = vmatprep.subr.mxu0 0.0
    %942 = vmatpush2.msra.mxu0 0.0
    %943 = vmatprep.subr.mxu0 0.0
    %944 = vmatpush2.msra.mxu0 0.0
    %945 = vmatprep.subr.mxu0 0.0
    %946 = vmatpush2.msra.mxu0 0.0
    %947 = vmatprep.subr.mxu0 0.0
    %948 = vmatpush2.msra.mxu0 0.0
    %949 = vmatprep.subr.mxu0 0.0
    %950 = vmatpush2.msra.mxu0 0.0
    %951 = vmatprep.subr.mxu0 0.0
    %952 = vmatpush2.msra.mxu0 0.0
    %953 = vmatprep.subr.mxu0 0.0
    %954 = vmatpush2.msra.mxu0 0.0
    %955 = vmatprep.subr.mxu0 0.0
    %956 = vmatpush2.msra.mxu0 0.0
    %957 = vmatprep.subr.mxu0 0.0
    %958 = vmatpush2.msra.mxu0 0.0
    %959 = vmatprep.subr.mxu0 0.0
    %960 = vmatpush2.msra.mxu0 0.0
    %961 = vmatprep.subr.mxu0 0.0
    %962 = vmatpush2.msra.mxu0 0.0
    %963 = vmatprep.subr.mxu0 0.0
    %964 = vmatpush2.msra.mxu0 0.0
    %965 = vmatprep.subr.mxu0 0.0
    %966 = vmatpush2.msra.mxu0 0.0
    %967 = vmatprep.subr.mxu0 0.0
    %968 = vmatpush2.msra.mxu0 0.0
    %969 = vmatprep.subr.mxu0 0.0
    %970 = vmatpush2.msra.mxu0 0.0
    %971 = vmatprep.subr.mxu0 0.0
    %972 = vmatpush2.msra.mxu0 0.0
    %973 = vmatprep.mubr.f32.mxu0 0.0
    %974 = vmatmul.mubr.f32.gmra.mxu0 %v905
    %v975 = vpop.f32.mrf.mxu0
    %v976 = vadd.f32 0.0, %v975
    %v977 = vpop.f32.mrf.mxu0
    %978 = vmatprep.mubr.f32.mxu0 0.0
    %979 = vmatmul.mubr.f32.gmra.mxu0 %v907
    %v980 = vpop.f32.mrf.mxu0
    %v981 = vadd.f32 0.0, %v980
    %v982 = vpop.f32.mrf.mxu0
    %983 = vdwg.mxu0
    %v984 = vtanh.pop %v976
    %v985 = vtanh.pop %v981
    %v986 = vmul.f32 %v985, 0.5
    %v987 = vadd.f32 %v986, 0.5
    %v988 = vmul.f32 %v984, %v987
    %989 = vrot.lane.b32.xlu0 %v162, 96
    %v990 = vpop.permute.xlu0 %989
    %991 = vrot.lane.b32.xlu0 %v163, 96
    %v992 = vpop.permute.xlu0 %991
    %993 = vrot.lane.b32.xlu0 %v164, 96
    %v994 = vpop.permute.xlu0 %993
    %v995 = vsel %vm253, %v990, 0
    %v997 = vsel %vm253, %v992, 0
    %v999 = vsel %vm253, %v994, 0
    %1001 = vmatprep.subr.mxu0 0.0
    %1002 = vmatpush1.msra.mxu0 0.0
    %1003 = vmatprep.subr.mxu0 0.0
    %1004 = vmatpush1.msra.mxu0 0.0
    %1005 = vmatprep.subr.mxu0 0.0
    %1006 = vmatpush1.msra.mxu0 0.0
    %1007 = vmatprep.subr.mxu0 0.0
    %1008 = vmatpush1.msra.mxu0 0.0
    %1009 = vmatprep.subr.mxu0 0.0
    %1010 = vmatpush1.msra.mxu0 0.0
    %1011 = vmatprep.subr.mxu0 0.0
    %1012 = vmatpush1.msra.mxu0 0.0
    %1013 = vmatprep.subr.mxu0 0.0
    %1014 = vmatpush1.msra.mxu0 0.0
    %1015 = vmatprep.subr.mxu0 0.0
    %1016 = vmatpush1.msra.mxu0 0.0
    %1017 = vmatprep.subr.mxu0 0.0
    %1018 = vmatpush1.msra.mxu0 0.0
    %1019 = vmatprep.subr.mxu0 0.0
    %1020 = vmatpush1.msra.mxu0 0.0
    %1021 = vmatprep.subr.mxu0 0.0
    %1022 = vmatpush1.msra.mxu0 0.0
    %1023 = vmatprep.subr.mxu0 0.0
    %1024 = vmatpush1.msra.mxu0 0.0
    %1025 = vmatprep.subr.mxu0 0.0
    %1026 = vmatpush1.msra.mxu0 0.0
    %1027 = vmatprep.subr.mxu0 0.0
    %1028 = vmatpush1.msra.mxu0 0.0
    %1029 = vmatprep.subr.mxu0 0.0
    %1030 = vmatpush1.msra.mxu0 0.0
    %1031 = vmatprep.subr.mxu0 0.0
    %1032 = vmatpush1.msra.mxu0 %v988
    %1033 = vmatprep.subr.mxu0 0.0
    %1034 = vmatpush2.msra.mxu0 0.0
    %1035 = vmatprep.subr.mxu0 0.0
    %1036 = vmatpush2.msra.mxu0 0.0
    %1037 = vmatprep.subr.mxu0 0.0
    %1038 = vmatpush2.msra.mxu0 0.0
    %1039 = vmatprep.subr.mxu0 0.0
    %1040 = vmatpush2.msra.mxu0 0.0
    %1041 = vmatprep.subr.mxu0 0.0
    %1042 = vmatpush2.msra.mxu0 0.0
    %1043 = vmatprep.subr.mxu0 0.0
    %1044 = vmatpush2.msra.mxu0 0.0
    %1045 = vmatprep.subr.mxu0 0.0
    %1046 = vmatpush2.msra.mxu0 0.0
    %1047 = vmatprep.subr.mxu0 0.0
    %1048 = vmatpush2.msra.mxu0 0.0
    %1049 = vmatprep.subr.mxu0 0.0
    %1050 = vmatpush2.msra.mxu0 0.0
    %1051 = vmatprep.subr.mxu0 0.0
    %1052 = vmatpush2.msra.mxu0 0.0
    %1053 = vmatprep.subr.mxu0 0.0
    %1054 = vmatpush2.msra.mxu0 0.0
    %1055 = vmatprep.subr.mxu0 0.0
    %1056 = vmatpush2.msra.mxu0 0.0
    %1057 = vmatprep.subr.mxu0 0.0
    %1058 = vmatpush2.msra.mxu0 0.0
    %1059 = vmatprep.subr.mxu0 0.0
    %1060 = vmatpush2.msra.mxu0 0.0
    %1061 = vmatprep.subr.mxu0 0.0
    %1062 = vmatpush2.msra.mxu0 0.0
    %1063 = vmatprep.subr.mxu0 0.0
    %1064 = vmatpush2.msra.mxu0 0.0
    %1065 = vmatprep.mubr.f32.mxu0 0.0
    %1066 = vmatmul.mubr.f32.gmra.mxu0 %v995
    %v1067 = vpop.f32.mrf.mxu0
    %v1068 = vadd.f32 0.0, %v1067
    %v1069 = vpop.f32.mrf.mxu0
    %1070 = vmatprep.mubr.f32.mxu0 0.0
    %1071 = vmatmul.mubr.f32.gmra.mxu0 %v997
    %v1072 = vpop.f32.mrf.mxu0
    %v1073 = vadd.f32 0.0, %v1072
    %v1074 = vpop.f32.mrf.mxu0
    %1075 = vmatprep.mubr.f32.mxu0 0.0
    %1076 = vmatmul.mubr.f32.gmra.mxu0 %v999
    %v1077 = vpop.f32.mrf.mxu0
    %v1078 = vadd.f32 0.0, %v1077
    %v1079 = vpop.f32.mrf.mxu0
    %1080 = vdwg.mxu0
    %v1081 = vadd.f32 %v1068, %v896
    %v1082 = vadd.f32 %v897, %v1073
    %v1083 = vadd.f32 %v898, %v1078
    %1084 = vrot.lane.b32.xlu0 %v1081, 4
    %v1085 = vpop.permute.xlu0 %1084
    %1086 = vrot.lane.b32.xlu0 %v160, 48
    %v1087 = vpop.permute.xlu0 %1086
    %1088 = vrot.lane.b32.xlu0 %v161, 48
    %v1089 = vpop.permute.xlu0 %1088
    %v1090 = vsel %vm86, %v1087, 0
    %v1092 = vsel %vm86, %v1089, 0
    %1094 = vmatprep.subr.mxu0 0.0
    %1095 = vmatpush1.msra.mxu0 0.0
    %1096 = vmatprep.subr.mxu0 0.0
    %1097 = vmatpush1.msra.mxu0 0.0
    %1098 = vmatprep.subr.mxu0 0.0
    %1099 = vmatpush1.msra.mxu0 0.0
    %1100 = vmatprep.subr.mxu0 0.0
    %1101 = vmatpush1.msra.mxu0 0.0
    %1102 = vmatprep.subr.mxu0 0.0
    %1103 = vmatpush1.msra.mxu0 0.0
    %1104 = vmatprep.subr.mxu0 0.0
    %1105 = vmatpush1.msra.mxu0 0.0
    %1106 = vmatprep.subr.mxu0 0.0
    %1107 = vmatpush1.msra.mxu0 0.0
    %1108 = vmatprep.subr.mxu0 0.0
    %1109 = vmatpush1.msra.mxu0 0.0
    %1110 = vmatprep.subr.mxu0 0.0
    %1111 = vmatpush1.msra.mxu0 0.0
    %1112 = vmatprep.subr.mxu0 0.0
    %1113 = vmatpush1.msra.mxu0 0.0
    %1114 = vmatprep.subr.mxu0 0.0
    %1115 = vmatpush1.msra.mxu0 0.0
    %1116 = vmatprep.subr.mxu0 0.0
    %1117 = vmatpush1.msra.mxu0 0.0
    %1118 = vmatprep.subr.mxu0 0.0
    %1119 = vmatpush1.msra.mxu0 0.0
    %1120 = vmatprep.subr.mxu0 0.0
    %1121 = vmatpush1.msra.mxu0 0.0
    %1122 = vmatprep.subr.mxu0 0.0
    %1123 = vmatpush1.msra.mxu0 %v1081
    %1124 = vmatprep.subr.mxu0 0.0
    %1125 = vmatpush1.msra.mxu0 %v1085
    %1126 = vmatprep.subr.mxu0 0.0
    %1127 = vmatpush2.msra.mxu0 0.0
    %1128 = vmatprep.subr.mxu0 0.0
    %1129 = vmatpush2.msra.mxu0 0.0
    %1130 = vmatprep.subr.mxu0 0.0
    %1131 = vmatpush2.msra.mxu0 0.0
    %1132 = vmatprep.subr.mxu0 0.0
    %1133 = vmatpush2.msra.mxu0 0.0
    %1134 = vmatprep.subr.mxu0 0.0
    %1135 = vmatpush2.msra.mxu0 0.0
    %1136 = vmatprep.subr.mxu0 0.0
    %1137 = vmatpush2.msra.mxu0 0.0
    %1138 = vmatprep.subr.mxu0 0.0
    %1139 = vmatpush2.msra.mxu0 0.0
    %1140 = vmatprep.subr.mxu0 0.0
    %1141 = vmatpush2.msra.mxu0 0.0
    %1142 = vmatprep.subr.mxu0 0.0
    %1143 = vmatpush2.msra.mxu0 0.0
    %1144 = vmatprep.subr.mxu0 0.0
    %1145 = vmatpush2.msra.mxu0 0.0
    %1146 = vmatprep.subr.mxu0 0.0
    %1147 = vmatpush2.msra.mxu0 0.0
    %1148 = vmatprep.subr.mxu0 0.0
    %1149 = vmatpush2.msra.mxu0 0.0
    %1150 = vmatprep.subr.mxu0 0.0
    %1151 = vmatpush2.msra.mxu0 0.0
    %1152 = vmatprep.subr.mxu0 0.0
    %1153 = vmatpush2.msra.mxu0 0.0
    %1154 = vmatprep.subr.mxu0 0.0
    %1155 = vmatpush2.msra.mxu0 0.0
    %1156 = vmatprep.subr.mxu0 0.0
    %1157 = vmatpush2.msra.mxu0 0.0
    %1158 = vmatprep.mubr.f32.mxu0 0.0
    %1159 = vmatmul.mubr.f32.gmra.mxu0 %v1090
    %v1160 = vpop.f32.mrf.mxu0
    %v1161 = vadd.f32 0.0, %v1160
    %v1162 = vpop.f32.mrf.mxu0
    %1163 = vmatprep.mubr.f32.mxu0 0.0
    %1164 = vmatmul.mubr.f32.gmra.mxu0 %v1092
    %v1165 = vpop.f32.mrf.mxu0
    %v1166 = vadd.f32 0.0, %v1165
    %v1167 = vpop.f32.mrf.mxu0
    %1168 = vdwg.mxu0
    %v1169 = vtanh.pop %v1161
    %v1170 = vtanh.pop %v1166
    %v1171 = vmul.f32 %v1170, 0.5
    %v1172 = vadd.f32 %v1171, 0.5
    %v1173 = vmul.f32 %v1169, %v1172
    %1174 = vrot.lane.b32.xlu0 %v162, 88
    %v1175 = vpop.permute.xlu0 %1174
    %1176 = vrot.lane.b32.xlu0 %v163, 88
    %v1177 = vpop.permute.xlu0 %1176
    %1178 = vrot.lane.b32.xlu0 %v164, 88
    %v1179 = vpop.permute.xlu0 %1178
    %v1180 = vsel %vm253, %v1175, 0
    %v1182 = vsel %vm253, %v1177, 0
    %v1184 = vsel %vm253, %v1179, 0
    %1186 = vmatprep.subr.mxu0 0.0
    %1187 = vmatpush1.msra.mxu0 0.0
    %1188 = vmatprep.subr.mxu0 0.0
    %1189 = vmatpush1.msra.mxu0 0.0
    %1190 = vmatprep.subr.mxu0 0.0
    %1191 = vmatpush1.msra.mxu0 0.0
    %1192 = vmatprep.subr.mxu0 0.0
    %1193 = vmatpush1.msra.mxu0 0.0
    %1194 = vmatprep.subr.mxu0 0.0
    %1195 = vmatpush1.msra.mxu0 0.0
    %1196 = vmatprep.subr.mxu0 0.0
    %1197 = vmatpush1.msra.mxu0 0.0
    %1198 = vmatprep.subr.mxu0 0.0
    %1199 = vmatpush1.msra.mxu0 0.0
    %1200 = vmatprep.subr.mxu0 0.0
    %1201 = vmatpush1.msra.mxu0 0.0
    %1202 = vmatprep.subr.mxu0 0.0
    %1203 = vmatpush1.msra.mxu0 0.0
    %1204 = vmatprep.subr.mxu0 0.0
    %1205 = vmatpush1.msra.mxu0 0.0
    %1206 = vmatprep.subr.mxu0 0.0
    %1207 = vmatpush1.msra.mxu0 0.0
    %1208 = vmatprep.subr.mxu0 0.0
    %1209 = vmatpush1.msra.mxu0 0.0
    %1210 = vmatprep.subr.mxu0 0.0
    %1211 = vmatpush1.msra.mxu0 0.0
    %1212 = vmatprep.subr.mxu0 0.0
    %1213 = vmatpush1.msra.mxu0 0.0
    %1214 = vmatprep.subr.mxu0 0.0
    %1215 = vmatpush1.msra.mxu0 0.0
    %1216 = vmatprep.subr.mxu0 0.0
    %1217 = vmatpush1.msra.mxu0 %v1173
    %1218 = vmatprep.subr.mxu0 0.0
    %1219 = vmatpush2.msra.mxu0 0.0
    %1220 = vmatprep.subr.mxu0 0.0
    %1221 = vmatpush2.msra.mxu0 0.0
    %1222 = vmatprep.subr.mxu0 0.0
    %1223 = vmatpush2.msra.mxu0 0.0
    %1224 = vmatprep.subr.mxu0 0.0
    %1225 = vmatpush2.msra.mxu0 0.0
    %1226 = vmatprep.subr.mxu0 0.0
    %1227 = vmatpush2.msra.mxu0 0.0
    %1228 = vmatprep.subr.mxu0 0.0
    %1229 = vmatpush2.msra.mxu0 0.0
    %1230 = vmatprep.subr.mxu0 0.0
    %1231 = vmatpush2.msra.mxu0 0.0
    %1232 = vmatprep.subr.mxu0 0.0
    %1233 = vmatpush2.msra.mxu0 0.0
    %1234 = vmatprep.subr.mxu0 0.0
    %1235 = vmatpush2.msra.mxu0 0.0
    %1236 = vmatprep.subr.mxu0 0.0
    %1237 = vmatpush2.msra.mxu0 0.0
    %1238 = vmatprep.subr.mxu0 0.0
    %1239 = vmatpush2.msra.mxu0 0.0
    %1240 = vmatprep.subr.mxu0 0.0
    %1241 = vmatpush2.msra.mxu0 0.0
    %1242 = vmatprep.subr.mxu0 0.0
    %1243 = vmatpush2.msra.mxu0 0.0
    %1244 = vmatprep.subr.mxu0 0.0
    %1245 = vmatpush2.msra.mxu0 0.0
    %1246 = vmatprep.subr.mxu0 0.0
    %1247 = vmatpush2.msra.mxu0 0.0
    %1248 = vmatprep.subr.mxu0 0.0
    %1249 = vmatpush2.msra.mxu0 0.0
    %1250 = vmatprep.mubr.f32.mxu0 0.0
    %1251 = vmatmul.mubr.f32.gmra.mxu0 %v1180
    %v1252 = vpop.f32.mrf.mxu0
    %v1253 = vpop.f32.mrf.mxu0
    %1254 = vmatprep.mubr.f32.mxu0 0.0
    %1255 = vmatmul.mubr.f32.gmra.mxu0 %v1182
    %v1256 = vpop.f32.mrf.mxu0
    %v1257 = vadd.f32 0.0, %v1256
    %v1258 = vpop.f32.mrf.mxu0
    %1259 = vmatprep.mubr.f32.mxu0 0.0
    %1260 = vmatmul.mubr.f32.gmra.mxu0 %v1184
    %v1261 = vpop.f32.mrf.mxu0
    %v1262 = vadd.f32 0.0, %v1261
    %v1263 = vpop.f32.mrf.mxu0
    %1264 = vdwg.mxu0
    %v1265 = vadd.f32 %v1082, %v1257
    %v1266 = vadd.f32 %v1083, %v1262
    %v1267 = vmax.f32 %v1265, 0.0
    %v1268 = vmax.f32 %v1266, 0.0
    %v1269 = vld [vmem:[%s4] sm:$0xff]
    %v1270 = vld [vmem:[%s4 + $0x8] sm:$0xff]
    %v1271 = vld [vmem:[%s5] sm:$0xff]
    %v1272 = vld [vmem:[%s5 + $0x8] sm:$0xff]
    %1274 = vset.pattern.permute.xlu0 0
    %1275 = vperm.xlu0 %1274, %v1271
    %v1276 = vpop.permute.xlu0 %1275
    %1279 = vset.pattern.permute.xlu0 0
    %1280 = vperm.xlu0 %1279, %v1272
    %v1281 = vpop.permute.xlu0 %1280
    %v1284 = vsel %vm86, %v1269, 0
    %v1287 = vsel %vm86, %v1270, 0
    %1289 = vmatprep.subr.mxu0 0.0
    %1290 = vmatpush1.msra.mxu0 0.0
    %1291 = vmatprep.subr.mxu0 0.0
    %1292 = vmatpush1.msra.mxu0 0.0
    %1293 = vmatprep.subr.mxu0 0.0
    %1294 = vmatpush1.msra.mxu0 0.0
    %1295 = vmatprep.subr.mxu0 0.0
    %1296 = vmatpush1.msra.mxu0 0.0
    %1297 = vmatprep.subr.mxu0 0.0
    %1298 = vmatpush1.msra.mxu0 0.0
    %1299 = vmatprep.subr.mxu0 0.0
    %1300 = vmatpush1.msra.mxu0 0.0
    %1301 = vmatprep.subr.mxu0 0.0
    %1302 = vmatpush1.msra.mxu0 0.0
    %1303 = vmatprep.subr.mxu0 0.0
    %1304 = vmatpush1.msra.mxu0 0.0
    %1305 = vmatprep.subr.mxu0 0.0
    %1306 = vmatpush1.msra.mxu0 0.0
    %1307 = vmatprep.subr.mxu0 0.0
    %1308 = vmatpush1.msra.mxu0 0.0
    %1309 = vmatprep.subr.mxu0 0.0
    %1310 = vmatpush1.msra.mxu0 0.0
    %1311 = vmatprep.subr.mxu0 0.0
    %1312 = vmatpush1.msra.mxu0 0.0
    %1313 = vmatprep.subr.mxu0 0.0
    %1314 = vmatpush1.msra.mxu0 0.0
    %1315 = vmatprep.subr.mxu0 0.0
    %1316 = vmatpush1.msra.mxu0 0.0
    %1317 = vmatprep.subr.mxu0 0.0
    %1318 = vmatpush1.msra.mxu0 %v1268
    %1319 = vmatprep.subr.mxu0 0.0
    %1320 = vmatpush1.msra.mxu0 %v1267
    %1321 = vmatprep.subr.mxu0 0.0
    %1322 = vmatpush2.msra.mxu0 0.0
    %1323 = vmatprep.subr.mxu0 0.0
    %1324 = vmatpush2.msra.mxu0 0.0
    %1325 = vmatprep.subr.mxu0 0.0
    %1326 = vmatpush2.msra.mxu0 0.0
    %1327 = vmatprep.subr.mxu0 0.0
    %1328 = vmatpush2.msra.mxu0 0.0
    %1329 = vmatprep.subr.mxu0 0.0
    %1330 = vmatpush2.msra.mxu0 0.0
    %1331 = vmatprep.subr.mxu0 0.0
    %1332 = vmatpush2.msra.mxu0 0.0
    %1333 = vmatprep.subr.mxu0 0.0
    %1334 = vmatpush2.msra.mxu0 0.0
    %1335 = vmatprep.subr.mxu0 0.0
    %1336 = vmatpush2.msra.mxu0 0.0
    %1337 = vmatprep.subr.mxu0 0.0
    %1338 = vmatpush2.msra.mxu0 0.0
    %1339 = vmatprep.subr.mxu0 0.0
    %1340 = vmatpush2.msra.mxu0 0.0
    %1341 = vmatprep.subr.mxu0 0.0
    %1342 = vmatpush2.msra.mxu0 0.0
    %1343 = vmatprep.subr.mxu0 0.0
    %1344 = vmatpush2.msra.mxu0 0.0
    %1345 = vmatprep.subr.mxu0 0.0
    %1346 = vmatpush2.msra.mxu0 0.0
    %1347 = vmatprep.subr.mxu0 0.0
    %1348 = vmatpush2.msra.mxu0 0.0
    %1349 = vmatprep.subr.mxu0 0.0
    %1350 = vmatpush2.msra.mxu0 0.0
    %1351 = vmatprep.subr.mxu0 0.0
    %1352 = vmatpush2.msra.mxu0 0.0
    %1353 = vmatprep.mubr.f32.mxu0 0.0
    %1354 = vmatmul.mubr.f32.gmra.mxu0 %v1284
    %v1355 = vpop.f32.mrf.mxu0
    %v1356 = vadd.f32 %v1276, %v1355
    %v1357 = vpop.f32.mrf.mxu0
    %1358 = vmatprep.mubr.f32.mxu0 0.0
    %1359 = vmatmul.mubr.f32.gmra.mxu0 %v1287
    %v1360 = vpop.f32.mrf.mxu0
    %v1361 = vadd.f32 %v1281, %v1360
    %v1362 = vpop.f32.mrf.mxu0
    %1363 = vdwg.mxu0
    %v1364 = vmax.f32 %v1356, 0.0
    %v1365 = vmax.f32 %v1361, 0.0
    %v1366 = vld [vmem:[#allocation8] sm:$0xff]
    %v1367 = vld [vmem:[#allocation8 + $0x8] sm:$0xff]
    %v1368 = vld [vmem:[%s7] sm:$0xff]
    %v1369 = vld [vmem:[%s7 + $0x8] sm:$0xff]
    %1371 = vset.pattern.permute.xlu0 0
    %1372 = vperm.xlu0 %1371, %v1368
    %v1373 = vpop.permute.xlu0 %1372
    %1376 = vset.pattern.permute.xlu0 0
    %1377 = vperm.xlu0 %1376, %v1369
    %v1378 = vpop.permute.xlu0 %1377
    %v1381 = vsel %vm86, %v1366, 0
    %v1384 = vsel %vm86, %v1367, 0
    %1386 = vmatprep.subr.mxu0 0.0
    %1387 = vmatpush1.msra.mxu0 0.0
    %1388 = vmatprep.subr.mxu0 0.0
    %1389 = vmatpush1.msra.mxu0 0.0
    %1390 = vmatprep.subr.mxu0 0.0
    %1391 = vmatpush1.msra.mxu0 0.0
    %1392 = vmatprep.subr.mxu0 0.0
    %1393 = vmatpush1.msra.mxu0 0.0
    %1394 = vmatprep.subr.mxu0 0.0
    %1395 = vmatpush1.msra.mxu0 0.0
    %1396 = vmatprep.subr.mxu0 0.0
    %1397 = vmatpush1.msra.mxu0 0.0
    %1398 = vmatprep.subr.mxu0 0.0
    %1399 = vmatpush1.msra.mxu0 0.0
    %1400 = vmatprep.subr.mxu0 0.0
    %1401 = vmatpush1.msra.mxu0 0.0
    %1402 = vmatprep.subr.mxu0 0.0
    %1403 = vmatpush1.msra.mxu0 0.0
    %1404 = vmatprep.subr.mxu0 0.0
    %1405 = vmatpush1.msra.mxu0 0.0
    %1406 = vmatprep.subr.mxu0 0.0
    %1407 = vmatpush1.msra.mxu0 0.0
    %1408 = vmatprep.subr.mxu0 0.0
    %1409 = vmatpush1.msra.mxu0 0.0
    %1410 = vmatprep.subr.mxu0 0.0
    %1411 = vmatpush1.msra.mxu0 0.0
    %1412 = vmatprep.subr.mxu0 0.0
    %1413 = vmatpush1.msra.mxu0 0.0
    %1414 = vmatprep.subr.mxu0 0.0
    %1415 = vmatpush1.msra.mxu0 %v1365
    %1416 = vmatprep.subr.mxu0 0.0
    %1417 = vmatpush1.msra.mxu0 %v1364
    %1418 = vmatprep.subr.mxu0 0.0
    %1419 = vmatpush2.msra.mxu0 0.0
    %1420 = vmatprep.subr.mxu0 0.0
    %1421 = vmatpush2.msra.mxu0 0.0
    %1422 = vmatprep.subr.mxu0 0.0
    %1423 = vmatpush2.msra.mxu0 0.0
    %1424 = vmatprep.subr.mxu0 0.0
    %1425 = vmatpush2.msra.mxu0 0.0
    %1426 = vmatprep.subr.mxu0 0.0
    %1427 = vmatpush2.msra.mxu0 0.0
    %1428 = vmatprep.subr.mxu0 0.0
    %1429 = vmatpush2.msra.mxu0 0.0
    %1430 = vmatprep.subr.mxu0 0.0
    %1431 = vmatpush2.msra.mxu0 0.0
    %1432 = vmatprep.subr.mxu0 0.0
    %1433 = vmatpush2.msra.mxu0 0.0
    %1434 = vmatprep.subr.mxu0 0.0
    %1435 = vmatpush2.msra.mxu0 0.0
    %1436 = vmatprep.subr.mxu0 0.0
    %1437 = vmatpush2.msra.mxu0 0.0
    %1438 = vmatprep.subr.mxu0 0.0
    %1439 = vmatpush2.msra.mxu0 0.0
    %1440 = vmatprep.subr.mxu0 0.0
    %1441 = vmatpush2.msra.mxu0 0.0
    %1442 = vmatprep.subr.mxu0 0.0
    %1443 = vmatpush2.msra.mxu0 0.0
    %1444 = vmatprep.subr.mxu0 0.0
    %1445 = vmatpush2.msra.mxu0 0.0
    %1446 = vmatprep.subr.mxu0 0.0
    %1447 = vmatpush2.msra.mxu0 0.0
    %1448 = vmatprep.subr.mxu0 0.0
    %1449 = vmatpush2.msra.mxu0 0.0
    %1450 = vmatprep.mubr.f32.mxu0 0.0
    %1451 = vmatmul.mubr.f32.gmra.mxu0 %v1381
    %v1452 = vpop.f32.mrf.mxu0
    %v1453 = vadd.f32 %v1373, %v1452
    %v1454 = vpop.f32.mrf.mxu0
    %1455 = vmatprep.mubr.f32.mxu0 0.0
    %1456 = vmatmul.mubr.f32.gmra.mxu0 %v1384
    %v1457 = vpop.f32.mrf.mxu0
    %v1458 = vadd.f32 %v1378, %v1457
    %v1459 = vpop.f32.mrf.mxu0
    %1460 = vdwg.mxu0
    %1461 = vst [vmem:[#allocation10] sm:$0xff] %v1453
    %1462 = vst [vmem:[#allocation10 + $0x8] sm:$0xff] %v1458
    // Predicated region
    $region50: #{tpu_custom_call.1} parent=1 // pred_check
      _
    $region51: #{tpu_custom_call.1} parent=1 // pred_check_branch
      %1464 = sbr.rel (0) target = $region53
    $region52: #{tpu_custom_call.1} parent=1 // pred_region
      %s1466 = ssub.s32 256, 256
      %1467 = vsyncadd [#allocation4], %s1466
      %s1468 = sshll.u32 [#allocation10], 4
      %s1469 = int_to_ptr.vmem [resolvable:$true] %s1468
      %1474 = dma.vmem_to_hbm [thread:$0]  %s1469, 256, %s8, [#allocation4], 128, 128, 8
    $region53: #{tpu_custom_call.1} parent=1 // pred_fallthru
      _
    // Predicated region
    $region54: #{tpu_custom_call.1} parent=1 // pred_check
      _
    $region55: #{tpu_custom_call.1} parent=1 // pred_check_branch
      %1476 = sbr.rel (0) target = $region57
    $region56: #{tpu_custom_call.1} parent=1 // pred_region
      %1477 = dma.done [#allocation4], 256
    $region57: #{tpu_custom_call.1} parent=1 // pred_fallthru
      _
    %1478 = vsyncpa [#allocation3], 1
    %1479 = vsyncpa [#allocation6], 1
    %1480 = vsyncpa [#allocation9], 1
    %1481 = vsyncpa [#allocation4], 1

</llo_original>
